<compile_context>
chip_gen: v7x
topology: tpu7x:2x2x1
jax: 0.10.0
libtpu: 0.0.40
codegen_flags: <defaults>
</compile_context>

<pallas_src>
import jax
import jax.numpy as jnp
from jax import lax
from jax.experimental import pallas as pl
from jax.experimental.pallas import tpu as pltpu


def _make_bottleneck_kernel(H, W, Cin, width, Cout):
    HW = H * W
    PAD = W + 1  # covers the max |offset| = W + 1 of the 3x3 taps

    def kernel(x_ref, w1_ref, b1_ref, w2_ref, b2_ref, w3_ref, b3_ref,
               cm_ref, out_ref):
        x = x_ref[0]                                          # (Cin, HW)

        # ---- conv1 (1x1, BN1 scale folded into w1) + bias + ReLU --------
        y1 = jnp.dot(w1_ref[...], x, preferred_element_type=jnp.float32)
        y1 = jnp.maximum(y1 + b1_ref[...], 0.0)               # (width, HW)

        # ---- conv2 (3x3, pad=1) -----------------------------------------
        # Zero-pad the flattened spatial axis by PAD lanes on each side; the
        # tap (dh, dw) is then the lane-slice at offset dh*W + dw.  Row (dh)
        # out-of-bounds positions land in the zero pad; column (dw) wrap-
        # around is removed with two precomputed edge masks.
        zpad = jnp.zeros((width, PAD), jnp.float32)
        y1p = jnp.concatenate([zpad, y1, zpad], axis=1)       # (width, HW+2*PAD)

        cm = cm_ref[...]                                      # (2, HW)
        mask_m1 = cm[0:1, :]                                  # valid where w-1 >= 0
        mask_p1 = cm[1:2, :]                                  # valid where w+1 <  W

        y2 = None
        for dw in (-1, 0, 1):
            part = None
            for dh in (-1, 0, 1):
                t = (dh + 1) * 3 + (dw + 1)                   # = dy*3 + dx
                off = dh * W + dw
                slab = y1p[:, PAD + off:PAD + off + HW]       # (width, HW)
                d = jnp.dot(w2_ref[t], slab,
                            preferred_element_type=jnp.float32)
                part = d if part is None else part + d
            if dw == -1:
                part = part * mask_m1
            elif dw == 1:
                part = part * mask_p1
            y2 = part if y2 is None else y2 + part
        y2 = jnp.maximum(y2 + b2_ref[...], 0.0)               # (width, HW)

        # ---- conv3 (1x1, BN3 scale folded) + bias + residual + ReLU -----
        y3 = jnp.dot(w3_ref[...], y2, preferred_element_type=jnp.float32)
        out_ref[0] = jnp.maximum(y3 + b3_ref[...] + x, 0.0)   # (Cout, HW)

    return kernel


def _fold_params(params):
    """Transpose weights for (C, H*W) math and fold BN scales into them."""
    w1, s1, b1, w2, s2, b2, w3, s3, b3 = params
    width = w1.shape[1]
    cout = w3.shape[1]
    w1t = jnp.transpose(w1 * s1)                              # (width, Cin)
    w3t = jnp.transpose(w3 * s3)                              # (Cout, width)
    w2s = w2 * s2.reshape(1, 1, 1, width)                     # scale out-chan
    w2t = jnp.transpose(w2s, (0, 1, 3, 2)).reshape(9, width, width)  # (tap,O,I)
    return (w1t.astype(jnp.float32), b1.reshape(width, 1),
            w2t.astype(jnp.float32), b2.reshape(width, 1),
            w3t.astype(jnp.float32), b3.reshape(cout, 1))


def bottleneck_forward(x_nchw, params):
    """x_nchw: (N, Cin, H, W) float32. Returns (N, Cout, H, W) float32."""
    N, Cin, H, W = x_nchw.shape
    HW = H * W
    w1t, b1, w2t, b2, w3t, b3 = _fold_params(params)
    width = w1t.shape[0]
    Cout = w3t.shape[0]
    assert Cin == Cout, "identity residual requires inplanes == planes*expansion"

    # Contiguous reshapes only — no NCHW<->NHWC transposes.
    x_flat = x_nchw.reshape(N, Cin, HW).astype(jnp.float32)

    # Column-edge validity masks for the dx = -1 / +1 taps of the 3x3 conv.
    col = jnp.arange(HW, dtype=jnp.int32) % W
    colmask = jnp.stack([(col >= 1).astype(jnp.float32),
                         (col <= W - 2).astype(jnp.float32)], axis=0)  # (2, HW)

    kernel = _make_bottleneck_kernel(H, W, Cin, width, Cout)
    out_flat = pl.pallas_call(
        kernel,
        out_shape=jax.ShapeDtypeStruct((N, Cout, HW), jnp.float32),
        grid_spec=pltpu.PrefetchScalarGridSpec(
            num_scalar_prefetch=0,
            grid=(N,),
            in_specs=[
                pl.BlockSpec((1, Cin, HW), lambda n: (n, 0, 0)),        # x
                pl.BlockSpec((width, Cin), lambda n: (0, 0)),           # w1t
                pl.BlockSpec((width, 1), lambda n: (0, 0)),             # b1
                pl.BlockSpec((9, width, width), lambda n: (0, 0, 0)),   # w2t
                pl.BlockSpec((width, 1), lambda n: (0, 0)),             # b2
                pl.BlockSpec((Cout, width), lambda n: (0, 0)),          # w3t
                pl.BlockSpec((Cout, 1), lambda n: (0, 0)),              # b3
                pl.BlockSpec((2, HW), lambda n: (0, 0)),                # colmask
            ],
            out_specs=pl.BlockSpec((1, Cout, HW), lambda n: (n, 0, 0)),
        ),
        compiler_params=pltpu.CompilerParams(
            dimension_semantics=("parallel",)),
    )(x_flat, w1t, b1, w2t, b2, w3t, b3, colmask)

    return out_flat.reshape(N, Cout, H, W)


def make_params(key, inplanes, planes, base_width=64, groups=1):
    """Deterministic synthetic weights; BN folded to per-channel scale/bias."""
    expansion = 4
    width = int(planes * (base_width / 64.0)) * groups
    cout = planes * expansion
    eps = 1e-5
    ks = list(jax.random.split(key, 15))

    def bn_fold(kg, kb, km, kv, c):
        gamma = 1.0 + 0.1 * jax.random.normal(kg, (c,), jnp.float32)
        beta = 0.1 * jax.random.normal(kb, (c,), jnp.float32)
        mean = 0.1 * jax.random.normal(km, (c,), jnp.float32)
        var = jax.random.uniform(kv, (c,), jnp.float32, 0.5, 1.5)
        scale = gamma / jnp.sqrt(var + eps)
        bias = beta - mean * scale
        return scale.reshape(1, c), bias.reshape(1, c)

    # conv weights stored for channels-last math:
    #   conv1: (Cin, width)  conv2: (3, 3, width, width) HWIO  conv3: (width, Cout)
    w1 = 0.1 * jax.random.normal(ks[0], (inplanes, width), jnp.float32)
    w2 = 0.1 * jax.random.normal(ks[1], (3, 3, width, width), jnp.float32)
    w3 = 0.1 * jax.random.normal(ks[2], (width, cout), jnp.float32)
    s1, b1 = bn_fold(ks[3], ks[4], ks[5], ks[6], width)
    s2, b2 = bn_fold(ks[7], ks[8], ks[9], ks[10], width)
    s3, b3 = bn_fold(ks[11], ks[12], ks[13], ks[14], cout)
    return (w1, s1, b1, w2, s2, b2, w3, s3, b3)


def reference_forward(x_nchw, params):
    """Pure-JAX (XLA conv) reference with the same folded-BN semantics."""
    w1, s1, b1, w2, s2, b2, w3, s3, b3 = params
    x = jnp.transpose(x_nchw, (0, 2, 3, 1)).astype(jnp.float32)
    dn = ('NHWC', 'HWIO', 'NHWC')
    y = lax.conv_general_dilated(x, w1.reshape(1, 1, *w1.shape), (1, 1),
                                 'VALID', dimension_numbers=dn)
    y = jnp.maximum(y * s1 + b1, 0.0)
    y = lax.conv_general_dilated(y, w2, (1, 1), ((1, 1), (1, 1)),
                                 dimension_numbers=dn)
    y = jnp.maximum(y * s2 + b2, 0.0)
    y = lax.conv_general_dilated(y, w3.reshape(1, 1, *w3.shape), (1, 1),
                                 'VALID', dimension_numbers=dn)
    y = y * s3 + b3
    y = jnp.maximum(y + x, 0.0)
    return jnp.transpose(y, (0, 3, 1, 2))


if __name__ == "__main__":
    # Bottleneck(inplanes=16, planes=4) -> width=4, out_channels=16 (== inplanes)
    N, INPLANES, PLANES, H, W = 2, 16, 4, 16, 16

    key = jax.random.PRNGKey(0)
    kx, kp = jax.random.split(key)
    x = jax.random.normal(kx, (N, INPLANES, H, W), jnp.float32)
    params = make_params(kp, INPLANES, PLANES)

    out = bottleneck_forward(x, params)
    out = jax.block_until_ready(out)

    ref = jax.block_until_ready(reference_forward(x, params))
    assert out.shape == (N, INPLANES, H, W)
    assert jnp.allclose(out, ref, rtol=1e-2, atol=1e-2), (
        float(jnp.max(jnp.abs(out - ref))))

    print("KERNEL_OK")
</pallas_src>

<mosaic_0001>
module attributes {stable_mosaic.version = 11 : i64} {
  func.func @kernel(%arg0: i32, %arg1: memref<1x16x256xf32, #tpu.memory_space<vmem>>, %arg2: memref<4x16xf32, #tpu.memory_space<vmem>>, %arg3: memref<4x1xf32, #tpu.memory_space<vmem>>, %arg4: memref<9x4x4xf32, #tpu.memory_space<vmem>>, %arg5: memref<4x1xf32, #tpu.memory_space<vmem>>, %arg6: memref<16x4xf32, #tpu.memory_space<vmem>>, %arg7: memref<16x1xf32, #tpu.memory_space<vmem>>, %arg8: memref<2x256xf32, #tpu.memory_space<vmem>>, %arg9: memref<1x16x256xf32, #tpu.memory_space<vmem>>) attributes {dimension_semantics = [#tpu.dimension_semantics<parallel>], iteration_bounds = array<i64: 2>, scalar_prefetch = 0 : i64, scratch_operands = 0 : i64, tpu.core_type = #tpu.core_type<tc>, window_params = [{transform_indices = @transform_0, window_bounds = array<i64: 1, 16, 256>}, {pipeline_mode = #tpu.pipeline_mode<synchronous>, transform_indices = @transform_1, window_bounds = array<i64: 4, 16>}, {pipeline_mode = #tpu.pipeline_mode<synchronous>, transform_indices = @transform_2, window_bounds = array<i64: 4, 1>}, {pipeline_mode = #tpu.pipeline_mode<synchronous>, transform_indices = @transform_3, window_bounds = array<i64: 9, 4, 4>}, {pipeline_mode = #tpu.pipeline_mode<synchronous>, transform_indices = @transform_4, window_bounds = array<i64: 4, 1>}, {pipeline_mode = #tpu.pipeline_mode<synchronous>, transform_indices = @transform_5, window_bounds = array<i64: 16, 4>}, {pipeline_mode = #tpu.pipeline_mode<synchronous>, transform_indices = @transform_6, window_bounds = array<i64: 16, 1>}, {pipeline_mode = #tpu.pipeline_mode<synchronous>, transform_indices = @transform_7, window_bounds = array<i64: 2, 256>}, {transform_indices = @transform_8, window_bounds = array<i64: 1, 16, 256>}]} {
    %c0 = arith.constant 0 : index
    %c0_0 = arith.constant 0 : index
    %c0_1 = arith.constant 0 : index
    %0 = vector.load %arg1[%c0, %c0_0, %c0_1] : memref<1x16x256xf32, #tpu.memory_space<vmem>>, vector<1x16x256xf32>
    %1 = vector.shape_cast %0 : vector<1x16x256xf32> to vector<16x256xf32>
    %c0_2 = arith.constant 0 : index
    %c0_3 = arith.constant 0 : index
    %2 = vector.load %arg2[%c0_2, %c0_3] : memref<4x16xf32, #tpu.memory_space<vmem>>, vector<4x16xf32>
    %cst = arith.constant dense<0.000000e+00> : vector<4x256xf32>
    %3 = tpu.matmul %2, %1, %cst {dimension_numbers = #tpu.dot_dimension_numbers<[1], [0], [0], [1], [0, 0, 1, 1], [], []>} : vector<4x16xf32>, vector<16x256xf32>, vector<4x256xf32> -> vector<4x256xf32>
    %c0_4 = arith.constant 0 : index
    %c0_5 = arith.constant 0 : index
    %4 = vector.load %arg3[%c0_4, %c0_5] : memref<4x1xf32, #tpu.memory_space<vmem>>, vector<4x1xf32>
    %5 = vector.broadcast %4 : vector<4x1xf32> to vector<4x256xf32>
    %6 = arith.addf %3, %5 : vector<4x256xf32>
    %cst_6 = arith.constant 0.000000e+00 : f32
    %7 = vector.broadcast %cst_6 : f32 to vector<4x256xf32>
    %8 = arith.maximumf %6, %7 : vector<4x256xf32>
    %cst_7 = arith.constant 0.000000e+00 : f32
    %9 = vector.broadcast %cst_7 : f32 to vector<4x17xf32>
    %10 = tpu.concatenate %9, %8, %9 in 1 : vector<4x17xf32>, vector<4x256xf32>, vector<4x17xf32> -> vector<4x290xf32>
    %c0_8 = arith.constant 0 : index
    %c0_9 = arith.constant 0 : index
    %11 = vector.load %arg8[%c0_8, %c0_9] : memref<2x256xf32, #tpu.memory_space<vmem>>, vector<2x256xf32>
    %12 = vector.extract_strided_slice %11 {offsets = [0, 0], sizes = [1, 256], strides = [1, 1]} : vector<2x256xf32> to vector<1x256xf32>
    %13 = vector.extract_strided_slice %11 {offsets = [1, 0], sizes = [1, 256], strides = [1, 1]} : vector<2x256xf32> to vector<1x256xf32>
    %14 = vector.extract_strided_slice %10 {offsets = [0, 0], sizes = [4, 256], strides = [1, 1]} : vector<4x290xf32> to vector<4x256xf32>
    %c0_10 = arith.constant 0 : index
    %c0_11 = arith.constant 0 : index
    %c0_12 = arith.constant 0 : index
    %15 = vector.load %arg4[%c0_10, %c0_11, %c0_12] : memref<9x4x4xf32, #tpu.memory_space<vmem>>, vector<1x4x4xf32>
    %16 = vector.shape_cast %15 : vector<1x4x4xf32> to vector<4x4xf32>
    %cst_13 = arith.constant dense<0.000000e+00> : vector<4x256xf32>
    %17 = tpu.matmul %16, %14, %cst_13 {dimension_numbers = #tpu.dot_dimension_numbers<[1], [0], [0], [1], [0, 0, 1, 1], [], []>} : vector<4x4xf32>, vector<4x256xf32>, vector<4x256xf32> -> vector<4x256xf32>
    %18 = vector.extract_strided_slice %10 {offsets = [0, 16], sizes = [4, 256], strides = [1, 1]} : vector<4x290xf32> to vector<4x256xf32>
    %c3 = arith.constant 3 : index
    %c0_14 = arith.constant 0 : index
    %c0_15 = arith.constant 0 : index
    %19 = vector.load %arg4[%c3, %c0_14, %c0_15] : memref<9x4x4xf32, #tpu.memory_space<vmem>>, vector<1x4x4xf32>
    %20 = vector.shape_cast %19 : vector<1x4x4xf32> to vector<4x4xf32>
    %cst_16 = arith.constant dense<0.000000e+00> : vector<4x256xf32>
    %21 = tpu.matmul %20, %18, %cst_16 {dimension_numbers = #tpu.dot_dimension_numbers<[1], [0], [0], [1], [0, 0, 1, 1], [], []>} : vector<4x4xf32>, vector<4x256xf32>, vector<4x256xf32> -> vector<4x256xf32>
    %22 = arith.addf %17, %21 : vector<4x256xf32>
    %23 = vector.extract_strided_slice %10 {offsets = [0, 32], sizes = [4, 256], strides = [1, 1]} : vector<4x290xf32> to vector<4x256xf32>
    %c6 = arith.constant 6 : index
    %c0_17 = arith.constant 0 : index
    %c0_18 = arith.constant 0 : index
    %24 = vector.load %arg4[%c6, %c0_17, %c0_18] : memref<9x4x4xf32, #tpu.memory_space<vmem>>, vector<1x4x4xf32>
    %25 = vector.shape_cast %24 : vector<1x4x4xf32> to vector<4x4xf32>
    %cst_19 = arith.constant dense<0.000000e+00> : vector<4x256xf32>
    %26 = tpu.matmul %25, %23, %cst_19 {dimension_numbers = #tpu.dot_dimension_numbers<[1], [0], [0], [1], [0, 0, 1, 1], [], []>} : vector<4x4xf32>, vector<4x256xf32>, vector<4x256xf32> -> vector<4x256xf32>
    %27 = arith.addf %22, %26 : vector<4x256xf32>
    %28 = vector.broadcast %12 : vector<1x256xf32> to vector<4x256xf32>
    %29 = arith.mulf %27, %28 : vector<4x256xf32>
    %30 = vector.extract_strided_slice %10 {offsets = [0, 1], sizes = [4, 256], strides = [1, 1]} : vector<4x290xf32> to vector<4x256xf32>
    %c1 = arith.constant 1 : index
    %c0_20 = arith.constant 0 : index
    %c0_21 = arith.constant 0 : index
    %31 = vector.load %arg4[%c1, %c0_20, %c0_21] : memref<9x4x4xf32, #tpu.memory_space<vmem>>, vector<1x4x4xf32>
    %32 = vector.shape_cast %31 : vector<1x4x4xf32> to vector<4x4xf32>
    %cst_22 = arith.constant dense<0.000000e+00> : vector<4x256xf32>
    %33 = tpu.matmul %32, %30, %cst_22 {dimension_numbers = #tpu.dot_dimension_numbers<[1], [0], [0], [1], [0, 0, 1, 1], [], []>} : vector<4x4xf32>, vector<4x256xf32>, vector<4x256xf32> -> vector<4x256xf32>
    %34 = vector.extract_strided_slice %10 {offsets = [0, 17], sizes = [4, 256], strides = [1, 1]} : vector<4x290xf32> to vector<4x256xf32>
    %c4 = arith.constant 4 : index
    %c0_23 = arith.constant 0 : index
    %c0_24 = arith.constant 0 : index
    %35 = vector.load %arg4[%c4, %c0_23, %c0_24] : memref<9x4x4xf32, #tpu.memory_space<vmem>>, vector<1x4x4xf32>
    %36 = vector.shape_cast %35 : vector<1x4x4xf32> to vector<4x4xf32>
    %cst_25 = arith.constant dense<0.000000e+00> : vector<4x256xf32>
    %37 = tpu.matmul %36, %34, %cst_25 {dimension_numbers = #tpu.dot_dimension_numbers<[1], [0], [0], [1], [0, 0, 1, 1], [], []>} : vector<4x4xf32>, vector<4x256xf32>, vector<4x256xf32> -> vector<4x256xf32>
    %38 = arith.addf %33, %37 : vector<4x256xf32>
    %39 = vector.extract_strided_slice %10 {offsets = [0, 33], sizes = [4, 256], strides = [1, 1]} : vector<4x290xf32> to vector<4x256xf32>
    %c7 = arith.constant 7 : index
    %c0_26 = arith.constant 0 : index
    %c0_27 = arith.constant 0 : index
    %40 = vector.load %arg4[%c7, %c0_26, %c0_27] : memref<9x4x4xf32, #tpu.memory_space<vmem>>, vector<1x4x4xf32>
    %41 = vector.shape_cast %40 : vector<1x4x4xf32> to vector<4x4xf32>
    %cst_28 = arith.constant dense<0.000000e+00> : vector<4x256xf32>
    %42 = tpu.matmul %41, %39, %cst_28 {dimension_numbers = #tpu.dot_dimension_numbers<[1], [0], [0], [1], [0, 0, 1, 1], [], []>} : vector<4x4xf32>, vector<4x256xf32>, vector<4x256xf32> -> vector<4x256xf32>
    %43 = arith.addf %38, %42 : vector<4x256xf32>
    %44 = arith.addf %29, %43 : vector<4x256xf32>
    %45 = vector.extract_strided_slice %10 {offsets = [0, 2], sizes = [4, 256], strides = [1, 1]} : vector<4x290xf32> to vector<4x256xf32>
    %c2 = arith.constant 2 : index
    %c0_29 = arith.constant 0 : index
    %c0_30 = arith.constant 0 : index
    %46 = vector.load %arg4[%c2, %c0_29, %c0_30] : memref<9x4x4xf32, #tpu.memory_space<vmem>>, vector<1x4x4xf32>
    %47 = vector.shape_cast %46 : vector<1x4x4xf32> to vector<4x4xf32>
    %cst_31 = arith.constant dense<0.000000e+00> : vector<4x256xf32>
    %48 = tpu.matmul %47, %45, %cst_31 {dimension_numbers = #tpu.dot_dimension_numbers<[1], [0], [0], [1], [0, 0, 1, 1], [], []>} : vector<4x4xf32>, vector<4x256xf32>, vector<4x256xf32> -> vector<4x256xf32>
    %49 = vector.extract_strided_slice %10 {offsets = [0, 18], sizes = [4, 256], strides = [1, 1]} : vector<4x290xf32> to vector<4x256xf32>
    %c5 = arith.constant 5 : index
    %c0_32 = arith.constant 0 : index
    %c0_33 = arith.constant 0 : index
    %50 = vector.load %arg4[%c5, %c0_32, %c0_33] : memref<9x4x4xf32, #tpu.memory_space<vmem>>, vector<1x4x4xf32>
    %51 = vector.shape_cast %50 : vector<1x4x4xf32> to vector<4x4xf32>
    %cst_34 = arith.constant dense<0.000000e+00> : vector<4x256xf32>
    %52 = tpu.matmul %51, %49, %cst_34 {dimension_numbers = #tpu.dot_dimension_numbers<[1], [0], [0], [1], [0, 0, 1, 1], [], []>} : vector<4x4xf32>, vector<4x256xf32>, vector<4x256xf32> -> vector<4x256xf32>
    %53 = arith.addf %48, %52 : vector<4x256xf32>
    %54 = vector.extract_strided_slice %10 {offsets = [0, 34], sizes = [4, 256], strides = [1, 1]} : vector<4x290xf32> to vector<4x256xf32>
    %c8 = arith.constant 8 : index
    %c0_35 = arith.constant 0 : index
    %c0_36 = arith.constant 0 : index
    %55 = vector.load %arg4[%c8, %c0_35, %c0_36] : memref<9x4x4xf32, #tpu.memory_space<vmem>>, vector<1x4x4xf32>
    %56 = vector.shape_cast %55 : vector<1x4x4xf32> to vector<4x4xf32>
    %cst_37 = arith.constant dense<0.000000e+00> : vector<4x256xf32>
    %57 = tpu.matmul %56, %54, %cst_37 {dimension_numbers = #tpu.dot_dimension_numbers<[1], [0], [0], [1], [0, 0, 1, 1], [], []>} : vector<4x4xf32>, vector<4x256xf32>, vector<4x256xf32> -> vector<4x256xf32>
    %58 = arith.addf %53, %57 : vector<4x256xf32>
    %59 = vector.broadcast %13 : vector<1x256xf32> to vector<4x256xf32>
    %60 = arith.mulf %58, %59 : vector<4x256xf32>
    %61 = arith.addf %44, %60 : vector<4x256xf32>
    %c0_38 = arith.constant 0 : index
    %c0_39 = arith.constant 0 : index
    %62 = vector.load %arg5[%c0_38, %c0_39] : memref<4x1xf32, #tpu.memory_space<vmem>>, vector<4x1xf32>
    %63 = vector.broadcast %62 : vector<4x1xf32> to vector<4x256xf32>
    %64 = arith.addf %61, %63 : vector<4x256xf32>
    %cst_40 = arith.constant 0.000000e+00 : f32
    %65 = vector.broadcast %cst_40 : f32 to vector<4x256xf32>
    %66 = arith.maximumf %64, %65 : vector<4x256xf32>
    %c0_41 = arith.constant 0 : index
    %c0_42 = arith.constant 0 : index
    %67 = vector.load %arg6[%c0_41, %c0_42] : memref<16x4xf32, #tpu.memory_space<vmem>>, vector<16x4xf32>
    %cst_43 = arith.constant dense<0.000000e+00> : vector<16x256xf32>
    %68 = tpu.matmul %67, %66, %cst_43 {dimension_numbers = #tpu.dot_dimension_numbers<[1], [0], [0], [1], [0, 0, 1, 1], [], []>} : vector<16x4xf32>, vector<4x256xf32>, vector<16x256xf32> -> vector<16x256xf32>
    %c0_44 = arith.constant 0 : index
    %c0_45 = arith.constant 0 : index
    %69 = vector.load %arg7[%c0_44, %c0_45] : memref<16x1xf32, #tpu.memory_space<vmem>>, vector<16x1xf32>
    %70 = vector.broadcast %69 : vector<16x1xf32> to vector<16x256xf32>
    %71 = arith.addf %68, %70 : vector<16x256xf32>
    %72 = arith.addf %71, %1 : vector<16x256xf32>
    %cst_46 = arith.constant 0.000000e+00 : f32
    %73 = vector.broadcast %cst_46 : f32 to vector<16x256xf32>
    %74 = arith.maximumf %72, %73 : vector<16x256xf32>
    %c0_47 = arith.constant 0 : index
    %c0_48 = arith.constant 0 : index
    %c0_49 = arith.constant 0 : index
    %75 = vector.load %arg9[%c0_47, %c0_48, %c0_49] : memref<1x16x256xf32, #tpu.memory_space<vmem>>, vector<1x16x256xf32>
    %76 = vector.shape_cast %75 : vector<1x16x256xf32> to vector<16x256xf32>
    %77 = vector.shape_cast %74 : vector<16x256xf32> to vector<1x16x256xf32>
    tpu.vector_store %arg9[%c0_47, %c0_48, %c0_49], %77 {strides = array<i32>} : memref<1x16x256xf32, #tpu.memory_space<vmem>>, vector<1x16x256xf32>,
    return
  }
  func.func @transform_0(%arg0: i32) -> (i32, i32, i32) {
    %c0_i32 = arith.constant 0 : i32
    %c0_i32_0 = arith.constant 0 : i32
    %c0_i32_1 = arith.constant 0 : i32
    return %arg0, %c0_i32, %c0_i32_0 : i32, i32, i32
  }
  func.func @transform_1(%arg0: i32) -> (i32, i32) {
    %c0_i32 = arith.constant 0 : i32
    %c0_i32_0 = arith.constant 0 : i32
    %c0_i32_1 = arith.constant 0 : i32
    return %c0_i32, %c0_i32_0 : i32, i32
  }
  func.func @transform_2(%arg0: i32) -> (i32, i32) {
    %c0_i32 = arith.constant 0 : i32
    %c0_i32_0 = arith.constant 0 : i32
    %c0_i32_1 = arith.constant 0 : i32
    return %c0_i32, %c0_i32_0 : i32, i32
  }
  func.func @transform_3(%arg0: i32) -> (i32, i32, i32) {
    %c0_i32 = arith.constant 0 : i32
    %c0_i32_0 = arith.constant 0 : i32
    %c0_i32_1 = arith.constant 0 : i32
    %c0_i32_2 = arith.constant 0 : i32
    return %c0_i32, %c0_i32_0, %c0_i32_1 : i32, i32, i32
  }
  func.func @transform_4(%arg0: i32) -> (i32, i32) {
    %c0_i32 = arith.constant 0 : i32
    %c0_i32_0 = arith.constant 0 : i32
    %c0_i32_1 = arith.constant 0 : i32
    return %c0_i32, %c0_i32_0 : i32, i32
  }
  func.func @transform_5(%arg0: i32) -> (i32, i32) {
    %c0_i32 = arith.constant 0 : i32
    %c0_i32_0 = arith.constant 0 : i32
    %c0_i32_1 = arith.constant 0 : i32
    return %c0_i32, %c0_i32_0 : i32, i32
  }
  func.func @transform_6(%arg0: i32) -> (i32, i32) {
    %c0_i32 = arith.constant 0 : i32
    %c0_i32_0 = arith.constant 0 : i32
    %c0_i32_1 = arith.constant 0 : i32
    return %c0_i32, %c0_i32_0 : i32, i32
  }
  func.func @transform_7(%arg0: i32) -> (i32, i32) {
    %c0_i32 = arith.constant 0 : i32
    %c0_i32_0 = arith.constant 0 : i32
    %c0_i32_1 = arith.constant 0 : i32
    return %c0_i32, %c0_i32_0 : i32, i32
  }
  func.func @transform_8(%arg0: i32) -> (i32, i32, i32) {
    %c0_i32 = arith.constant 0 : i32
    %c0_i32_0 = arith.constant 0 : i32
    %c0_i32_1 = arith.constant 0 : i32
    return %arg0, %c0_i32, %c0_i32_0 : i32, i32, i32
  }
}

</mosaic_0001>

<llo_original>
// kernel: tpu_custom_call.1
$region0: #{tpu_custom_call.1}
  #allocation0 [shape = 'u32[]', space=smem, size = 0x4, offset = 0x4, fixed_abs, tag = 'smem constant byte address 0x4 - core index']
  #allocation1 [shape = 'u32[144,128]{1,0:T(1,128)}', space=vmem, size = 0x12000, scoped, tag = 'internal scratch']
  %s0 = inlined_call_operand.vmem [shape: f32[2,16,256], index: 0, kind: input, shape index: {}]
  %s1 = inlined_call_operand.vmem [shape: f32[4,16], index: 1, kind: input, shape index: {}]
  %s2 = inlined_call_operand.vmem [shape: f32[4,1], index: 2, kind: input, shape index: {}]
  %s3 = inlined_call_operand.vmem [shape: f32[9,4,4], index: 3, kind: input, shape index: {}]
  %s4 = inlined_call_operand.vmem [shape: f32[4,1], index: 4, kind: input, shape index: {}]
  %s5 = inlined_call_operand.vmem [shape: f32[16,4], index: 5, kind: input, shape index: {}]
  %s6 = inlined_call_operand.vmem [shape: f32[16,1], index: 6, kind: input, shape index: {}]
  %s7 = inlined_call_operand.vmem [shape: f32[2,256], index: 7, kind: input, shape index: {}]
  %s8 = inlined_call_operand.hbm [shape: f32[2,16,256], index: 8, kind: output, shape index: {}]
  %s9 = sld [smem:[#allocation0]]
  $region65: #{tpu_custom_call.1} parent=0
    _
  %s11 = ssub.s32 1, %s9
  %s12 = scalar_select 0, %s11, %s9
  $region1: #{tpu_custom_call.1} parent=0
    #allocation2 [shape = 'u8[32768]{0}', space=vmem, size = 0x8000, scoped, tag = 'output window, operand 0']
    #allocation3 [shape = 's32[2]{0}', space=sflag, size = 0x8, scoped, tag = 'scoped memory for tpu_custom_call.1']
    %13 = vsyncpa [#allocation3], 0
    %s14 = scalar_lea.sflag [#allocation3], 1
    %15 = vsyncpa %s14, 0
    loop: start=0, step=1, limit=4
    $region2: #{tpu_custom_call.1} parent=1 // loop_pre_header
      _
    $region3: #{tpu_custom_call.1} parent=1 // loop_header
      %s17 = sphi 0, %s21
      %p18 = scmp.ge.s32.totalorder %s17, 4
      %s27 = sphi 0, %s29
      %s30 = sphi 0, %s27
      %s31 = sphi 0, %s30
      %s47 = sphi 0, %s31
      %s51 = sphi 0, %s51
      %s53 = sphi 0, %s51
      %s54 = sphi 0, %s53
      %s68 = sphi 0, %s54
      %s72 = sphi 0, %s72
      %s74 = sphi 0, %s72
      %s75 = sphi 0, %s74
      %s89 = sphi 0, %s75
      %s93 = sphi 0, %s93
      %s95 = sphi 0, %s93
      %s96 = sphi 0, %s95
      %s110 = sphi 0, %s96
      %s114 = sphi 0, %s114
      %s116 = sphi 0, %s114
      %s117 = sphi 0, %s116
      %s131 = sphi 0, %s117
      %s135 = sphi 0, %s135
      %s137 = sphi 0, %s135
      %s138 = sphi 0, %s137
      %s152 = sphi 0, %s138
      %s156 = sphi 0, %s156
      %s158 = sphi 0, %s156
      %s159 = sphi 0, %s158
      %s173 = sphi 0, %s159
      %s177 = sphi 0, %s177
      %s179 = sphi 0, %s177
      %s180 = sphi 0, %s179
      %s194 = sphi 0, %s180
      %s200 = sphi 0, %s202
      %s203 = sphi 0, %s200
      %s204 = sphi 0, %s203
      %s220 = sphi 0, %s204
    $region4: #{tpu_custom_call.1} parent=1 // loop_header_branch
      %20 = sbr.rel (%p18) target = $region8
    $region5: #{tpu_custom_call.1} parent=1 // loop_body
      %s22 = ssub.s32 %s17, 1
      %s23 = ssub.s32 %s17, 2
      %s24 = sadd.s32 %s17, 1
      %s25 = ssub.s32 %s17, %s24
      %p26 = scmp.eq.s32.totalorder %s25, 0
      %s28 = sadd.s32 %s27, 1
      %s29 = scalar_select %p26, %s27, %s28
      %p32 = pneg %p26
      %p33 = scmp.eq.s32.totalorder %s17, 1
      %p34 = por %p32, %p33
      %p35 = scmp.ne.s32.totalorder %s27, %s30
      %p36 = scmp.eq.s32.totalorder %s17, 0
      %p37 = por %p35, %p36
      %p38 = scmp.ne.s32.totalorder %s27, %s30
      %p39 = scmp.eq.s32.totalorder %s22, 1
      %p40 = por %p38, %p39
      %p41 = scmp.ne.s32.totalorder %s30, %s31
      %p42 = scmp.eq.s32.totalorder %s22, 0
      %p43 = por %p41, %p42
      %p44 = scmp.ne.s32.totalorder %s30, %s31
      %p45 = scmp.eq.s32.totalorder %s23, 1
      %p46 = por %p44, %p45
      %p48 = scmp.ne.s32.totalorder %s31, %s47
      %p49 = scmp.eq.s32.totalorder %s23, 0
      %p50 = por %p48, %p49
      %s52 = sadd.s32 %s51, 1
      %p55 = scmp.eq.s32.totalorder %s17, 1
      %p56 = scmp.ne.s32.totalorder %s51, %s53
      %p57 = scmp.eq.s32.totalorder %s17, 0
      %p58 = por %p56, %p57
      %p59 = scmp.ne.s32.totalorder %s51, %s53
      %p60 = scmp.eq.s32.totalorder %s22, 1
      %p61 = por %p59, %p60
      %p62 = scmp.ne.s32.totalorder %s53, %s54
      %p63 = scmp.eq.s32.totalorder %s22, 0
      %p64 = por %p62, %p63
      %p65 = scmp.ne.s32.totalorder %s53, %s54
      %p66 = scmp.eq.s32.totalorder %s23, 1
      %p67 = por %p65, %p66
      %p69 = scmp.ne.s32.totalorder %s54, %s68
      %p70 = scmp.eq.s32.totalorder %s23, 0
      %p71 = por %p69, %p70
      %s73 = sadd.s32 %s72, 1
      %p76 = scmp.eq.s32.totalorder %s17, 1
      %p77 = scmp.ne.s32.totalorder %s72, %s74
      %p78 = scmp.eq.s32.totalorder %s17, 0
      %p79 = por %p77, %p78
      %p80 = scmp.ne.s32.totalorder %s72, %s74
      %p81 = scmp.eq.s32.totalorder %s22, 1
      %p82 = por %p80, %p81
      %p83 = scmp.ne.s32.totalorder %s74, %s75
      %p84 = scmp.eq.s32.totalorder %s22, 0
      %p85 = por %p83, %p84
      %p86 = scmp.ne.s32.totalorder %s74, %s75
      %p87 = scmp.eq.s32.totalorder %s23, 1
      %p88 = por %p86, %p87
      %p90 = scmp.ne.s32.totalorder %s75, %s89
      %p91 = scmp.eq.s32.totalorder %s23, 0
      %p92 = por %p90, %p91
      %s94 = sadd.s32 %s93, 1
      %p97 = scmp.eq.s32.totalorder %s17, 1
      %p98 = scmp.ne.s32.totalorder %s93, %s95
      %p99 = scmp.eq.s32.totalorder %s17, 0
      %p100 = por %p98, %p99
      %p101 = scmp.ne.s32.totalorder %s93, %s95
      %p102 = scmp.eq.s32.totalorder %s22, 1
      %p103 = por %p101, %p102
      %p104 = scmp.ne.s32.totalorder %s95, %s96
      %p105 = scmp.eq.s32.totalorder %s22, 0
      %p106 = por %p104, %p105
      %p107 = scmp.ne.s32.totalorder %s95, %s96
      %p108 = scmp.eq.s32.totalorder %s23, 1
      %p109 = por %p107, %p108
      %p111 = scmp.ne.s32.totalorder %s96, %s110
      %p112 = scmp.eq.s32.totalorder %s23, 0
      %p113 = por %p111, %p112
      %s115 = sadd.s32 %s114, 1
      %p118 = scmp.eq.s32.totalorder %s17, 1
      %p119 = scmp.ne.s32.totalorder %s114, %s116
      %p120 = scmp.eq.s32.totalorder %s17, 0
      %p121 = por %p119, %p120
      %p122 = scmp.ne.s32.totalorder %s114, %s116
      %p123 = scmp.eq.s32.totalorder %s22, 1
      %p124 = por %p122, %p123
      %p125 = scmp.ne.s32.totalorder %s116, %s117
      %p126 = scmp.eq.s32.totalorder %s22, 0
      %p127 = por %p125, %p126
      %p128 = scmp.ne.s32.totalorder %s116, %s117
      %p129 = scmp.eq.s32.totalorder %s23, 1
      %p130 = por %p128, %p129
      %p132 = scmp.ne.s32.totalorder %s117, %s131
      %p133 = scmp.eq.s32.totalorder %s23, 0
      %p134 = por %p132, %p133
      %s136 = sadd.s32 %s135, 1
      %p139 = scmp.eq.s32.totalorder %s17, 1
      %p140 = scmp.ne.s32.totalorder %s135, %s137
      %p141 = scmp.eq.s32.totalorder %s17, 0
      %p142 = por %p140, %p141
      %p143 = scmp.ne.s32.totalorder %s135, %s137
      %p144 = scmp.eq.s32.totalorder %s22, 1
      %p145 = por %p143, %p144
      %p146 = scmp.ne.s32.totalorder %s137, %s138
      %p147 = scmp.eq.s32.totalorder %s22, 0
      %p148 = por %p146, %p147
      %p149 = scmp.ne.s32.totalorder %s137, %s138
      %p150 = scmp.eq.s32.totalorder %s23, 1
      %p151 = por %p149, %p150
      %p153 = scmp.ne.s32.totalorder %s138, %s152
      %p154 = scmp.eq.s32.totalorder %s23, 0
      %p155 = por %p153, %p154
      %s157 = sadd.s32 %s156, 1
      %p160 = scmp.eq.s32.totalorder %s17, 1
      %p161 = scmp.ne.s32.totalorder %s156, %s158
      %p162 = scmp.eq.s32.totalorder %s17, 0
      %p163 = por %p161, %p162
      %p164 = scmp.ne.s32.totalorder %s156, %s158
      %p165 = scmp.eq.s32.totalorder %s22, 1
      %p166 = por %p164, %p165
      %p167 = scmp.ne.s32.totalorder %s158, %s159
      %p168 = scmp.eq.s32.totalorder %s22, 0
      %p169 = por %p167, %p168
      %p170 = scmp.ne.s32.totalorder %s158, %s159
      %p171 = scmp.eq.s32.totalorder %s23, 1
      %p172 = por %p170, %p171
      %p174 = scmp.ne.s32.totalorder %s159, %s173
      %p175 = scmp.eq.s32.totalorder %s23, 0
      %p176 = por %p174, %p175
      %s178 = sadd.s32 %s177, 1
      %p181 = scmp.eq.s32.totalorder %s17, 1
      %p182 = scmp.ne.s32.totalorder %s177, %s179
      %p183 = scmp.eq.s32.totalorder %s17, 0
      %p184 = por %p182, %p183
      %p185 = scmp.ne.s32.totalorder %s177, %s179
      %p186 = scmp.eq.s32.totalorder %s22, 1
      %p187 = por %p185, %p186
      %p188 = scmp.ne.s32.totalorder %s179, %s180
      %p189 = scmp.eq.s32.totalorder %s22, 0
      %p190 = por %p188, %p189
      %p191 = scmp.ne.s32.totalorder %s179, %s180
      %p192 = scmp.eq.s32.totalorder %s23, 1
      %p193 = por %p191, %p192
      %p195 = scmp.ne.s32.totalorder %s180, %s194
      %p196 = scmp.eq.s32.totalorder %s23, 0
      %p197 = por %p195, %p196
      %s198 = ssub.s32 %s17, %s24
      %p199 = scmp.eq.s32.totalorder %s198, 0
      %s201 = sadd.s32 %s200, 1
      %s202 = scalar_select %p199, %s200, %s201
      %p205 = pneg %p199
      %p206 = scmp.eq.s32.totalorder %s17, 1
      %p207 = por %p205, %p206
      %p208 = scmp.ne.s32.totalorder %s200, %s203
      %p209 = scmp.eq.s32.totalorder %s17, 0
      %p210 = por %p208, %p209
      %p211 = scmp.ne.s32.totalorder %s200, %s203
      %p212 = scmp.eq.s32.totalorder %s22, 1
      %p213 = por %p211, %p212
      %p214 = scmp.ne.s32.totalorder %s203, %s204
      %p215 = scmp.eq.s32.totalorder %s22, 0
      %p216 = por %p214, %p215
      %p217 = scmp.ne.s32.totalorder %s203, %s204
      %p218 = scmp.eq.s32.totalorder %s23, 1
      %p219 = por %p217, %p218
      %p221 = scmp.ne.s32.totalorder %s204, %s220
      %p222 = scmp.eq.s32.totalorder %s23, 0
      %p223 = por %p221, %p222
      %p224 = scmp.le.s32.totalorder 1, %s17
      %p225 = scmp.lt.s32.totalorder %s17, 3
      %p226 = pnand %p224, %p225
      %p227 = pneg %p226
      // Predicated region
      $region9: #{tpu_custom_call.1} parent=5 // pred_check
        _
      $region10: #{tpu_custom_call.1} parent=5 // pred_check_branch
        %229 = sbr.rel (%p226) target = $region12
      $region11: #{tpu_custom_call.1} parent=5 // pred_region
        %s230 = ssub.s32 %s17, 1
        // Predicated region
        $region13: #{tpu_custom_call.1} parent=11 // pred_check
          %p231 = pneg %p64
        $region14: #{tpu_custom_call.1} parent=11 // pred_check_branch
          %233 = sbr.rel (%p231) target = $region16
        $region15: #{tpu_custom_call.1} parent=11 // pred_region
          _
        $region16: #{tpu_custom_call.1} parent=11 // pred_fallthru
          _
        // Predicated region
        $region17: #{tpu_custom_call.1} parent=11 // pred_check
          %p234 = pneg %p85
        $region18: #{tpu_custom_call.1} parent=11 // pred_check_branch
          %236 = sbr.rel (%p234) target = $region20
        $region19: #{tpu_custom_call.1} parent=11 // pred_region
          _
        $region20: #{tpu_custom_call.1} parent=11 // pred_fallthru
          _
        // Predicated region
        $region21: #{tpu_custom_call.1} parent=11 // pred_check
          %p237 = pneg %p106
        $region22: #{tpu_custom_call.1} parent=11 // pred_check_branch
          %239 = sbr.rel (%p237) target = $region24
        $region23: #{tpu_custom_call.1} parent=11 // pred_region
          _
        $region24: #{tpu_custom_call.1} parent=11 // pred_fallthru
          _
        // Predicated region
        $region25: #{tpu_custom_call.1} parent=11 // pred_check
          %p240 = pneg %p127
        $region26: #{tpu_custom_call.1} parent=11 // pred_check_branch
          %242 = sbr.rel (%p240) target = $region28
        $region27: #{tpu_custom_call.1} parent=11 // pred_region
          _
        $region28: #{tpu_custom_call.1} parent=11 // pred_fallthru
          _
        // Predicated region
        $region29: #{tpu_custom_call.1} parent=11 // pred_check
          %p243 = pneg %p148
        $region30: #{tpu_custom_call.1} parent=11 // pred_check_branch
          %245 = sbr.rel (%p243) target = $region32
        $region31: #{tpu_custom_call.1} parent=11 // pred_region
          _
        $region32: #{tpu_custom_call.1} parent=11 // pred_fallthru
          _
        // Predicated region
        $region33: #{tpu_custom_call.1} parent=11 // pred_check
          %p246 = pneg %p169
        $region34: #{tpu_custom_call.1} parent=11 // pred_check_branch
          %248 = sbr.rel (%p246) target = $region36
        $region35: #{tpu_custom_call.1} parent=11 // pred_region
          _
        $region36: #{tpu_custom_call.1} parent=11 // pred_fallthru
          _
        // Predicated region
        $region37: #{tpu_custom_call.1} parent=11 // pred_check
          %p249 = pneg %p190
        $region38: #{tpu_custom_call.1} parent=11 // pred_check_branch
          %251 = sbr.rel (%p249) target = $region40
        $region39: #{tpu_custom_call.1} parent=11 // pred_region
          _
        $region40: #{tpu_custom_call.1} parent=11 // pred_fallthru
          _
      $region12: #{tpu_custom_call.1} parent=5 // pred_fallthru
        _
      %p252 = scmp.lt.s32.totalorder %s17, 2
      // Predicated region
      $region41: #{tpu_custom_call.1} parent=5 // pred_check
        %p253 = pneg %p252
      $region42: #{tpu_custom_call.1} parent=5 // pred_check_branch
        %255 = sbr.rel (%p253) target = $region44
      $region43: #{tpu_custom_call.1} parent=5 // pred_region
        // Predicated region
        $region45: #{tpu_custom_call.1} parent=43 // pred_check
          %p256 = pneg %p37
        $region46: #{tpu_custom_call.1} parent=43 // pred_check_branch
          %258 = sbr.rel (%p256) target = $region48
        $region47: #{tpu_custom_call.1} parent=43 // pred_region
          %p259 = scmp.lt.s32.totalorder %s17, 1
          %s260 = scalar_select %p259, %s17, 1
          %s261 = smul.addr %s260, 4
          %s262 = smul.addr %s261, 8
          %s263 = scalar_lea.vmem %s0, %s262
        $region48: #{tpu_custom_call.1} parent=43 // pred_fallthru
          _
      $region44: #{tpu_custom_call.1} parent=5 // pred_fallthru
        _
      %p264 = scmp.le.s32.totalorder 1, %s17
      %p265 = scmp.lt.s32.totalorder %s17, 3
      %p266 = pnand %p264, %p265
      %p267 = pneg %p266
      // Predicated region
      $region49: #{tpu_custom_call.1} parent=5 // pred_check
        _
      $region50: #{tpu_custom_call.1} parent=5 // pred_check_branch
        %269 = sbr.rel (%p266) target = $region52
      $region51: #{tpu_custom_call.1} parent=5 // pred_region
        %s270 = ssub.s32 %s17, 1
        %p271 = scmp.lt.s32.totalorder %s22, 1
        %s272 = scalar_select %p271, %s22, 1
        %s273 = smul.addr %s272, 4
        %s274 = smul.addr %s273, 8
        %s275 = scalar_lea.vmem %s0, %s274
        %p276 = pneg %p43
        %p277 = pneg %p40
        %p278 = pneg %p64
        %p279 = pneg %p61
        %p280 = pneg %p85
        %p281 = pneg %p82
        %p282 = pneg %p106
        %p283 = pneg %p103
        %p284 = pneg %p127
        %p285 = pneg %p124
        %p286 = pneg %p148
        %p287 = pneg %p145
        %p288 = pneg %p169
        %p289 = pneg %p166
        %p290 = pneg %p190
        %p291 = pneg %p187
        %p292 = pneg %p216
        %p293 = pneg %p213
        %s294 = sand.u32 %s203, 1
        %s295 = scalar_lea.sflag [#allocation3], %s294
        %s296 = sand.u32 %s203, 1
        %s297 = smul.addr %s296, 32
        %s298 = scalar_lea.vmem [#allocation2], %s297
        %p299 = scmp.lt.s32.totalorder %s22, 1
        %s300 = scalar_select %p299, %s22, 1
        %s301 = smul.addr %s300, 4
        %s302 = smul.addr %s301, 8
        %s303 = scalar_lea.vmem %s0, %s302
        %v304 = vld [vmem:[%s303] sm:$0xff]
        %v305 = vld [vmem:[%s303 + $0x8] sm:$0xff]
        %v306 = vld [vmem:[%s303 + $0x10] sm:$0xff]
        %v307 = vld [vmem:[%s303 + $0x18] sm:$0xff]
        %v308 = vld [vmem:[%s1] sm:$0xf]
        %v309 = vld [vmem:[%s2] sm:$0xf]
        %311 = vset.pattern.permute.xlu0 0
        %312 = vperm.xlu0 %311, %v309
        %v313 = vpop.permute.xlu0 %312
        %vm315 = vcmask 130048
        %v317 = vsel %vm315, %v308, 0
        %319 = vmatprep.subr.mxu0 %v305
        %320 = vmatpush1.msra.mxu0 %v304
        %321 = vmatprep.subr.mxu0 %v307
        %322 = vmatpush1.msra.mxu0 %v306
        %323 = vmatprep.subr.mxu0 0.0
        %324 = vmatpush1.msra.mxu0 0.0
        %325 = vmatprep.subr.mxu0 0.0
        %326 = vmatpush1.msra.mxu0 0.0
        %327 = vmatprep.subr.mxu0 0.0
        %328 = vmatpush1.msra.mxu0 0.0
        %329 = vmatprep.subr.mxu0 0.0
        %330 = vmatpush1.msra.mxu0 0.0
        %331 = vmatprep.subr.mxu0 0.0
        %332 = vmatpush1.msra.mxu0 0.0
        %333 = vmatprep.subr.mxu0 0.0
        %334 = vmatpush1.msra.mxu0 0.0
        %335 = vmatprep.subr.mxu0 0.0
        %336 = vmatpush1.msra.mxu0 0.0
        %337 = vmatprep.subr.mxu0 0.0
        %338 = vmatpush1.msra.mxu0 0.0
        %339 = vmatprep.subr.mxu0 0.0
        %340 = vmatpush1.msra.mxu0 0.0
        %341 = vmatprep.subr.mxu0 0.0
        %342 = vmatpush1.msra.mxu0 0.0
        %343 = vmatprep.subr.mxu0 0.0
        %344 = vmatpush1.msra.mxu0 0.0
        %345 = vmatprep.subr.mxu0 0.0
        %346 = vmatpush1.msra.mxu0 0.0
        %347 = vmatprep.subr.mxu0 0.0
        %348 = vmatpush1.msra.mxu0 0.0
        %349 = vmatprep.subr.mxu0 0.0
        %350 = vmatpush1.msra.mxu0 0.0
        %351 = vmatprep.subr.mxu0 0.0
        %352 = vmatpush1.msra.mxu0 0.0
        %353 = vmatprep.subr.mxu0 0.0
        %354 = vmatpush1.msra.mxu0 0.0
        %355 = vmatprep.subr.mxu0 0.0
        %356 = vmatpush1.msra.mxu0 0.0
        %357 = vmatprep.subr.mxu0 0.0
        %358 = vmatpush1.msra.mxu0 0.0
        %359 = vmatprep.subr.mxu0 0.0
        %360 = vmatpush1.msra.mxu0 0.0
        %361 = vmatprep.subr.mxu0 0.0
        %362 = vmatpush1.msra.mxu0 0.0
        %363 = vmatprep.subr.mxu0 0.0
        %364 = vmatpush1.msra.mxu0 0.0
        %365 = vmatprep.subr.mxu0 0.0
        %366 = vmatpush1.msra.mxu0 0.0
        %367 = vmatprep.subr.mxu0 0.0
        %368 = vmatpush1.msra.mxu0 0.0
        %369 = vmatprep.subr.mxu0 0.0
        %370 = vmatpush1.msra.mxu0 0.0
        %371 = vmatprep.subr.mxu0 0.0
        %372 = vmatpush1.msra.mxu0 0.0
        %373 = vmatprep.subr.mxu0 0.0
        %374 = vmatpush1.msra.mxu0 0.0
        %375 = vmatprep.subr.mxu0 0.0
        %376 = vmatpush1.msra.mxu0 0.0
        %377 = vmatprep.subr.mxu0 0.0
        %378 = vmatpush1.msra.mxu0 0.0
        %379 = vmatprep.subr.mxu0 0.0
        %380 = vmatpush1.msra.mxu0 0.0
        %381 = vmatprep.subr.mxu0 0.0
        %382 = vmatpush1.msra.mxu0 0.0
        %383 = vmatprep.mubr.f32.mxu0 0.0
        %384 = vmatmul.mubr.f32.gmra.mrb[0].mxu0 %v317
        %v385 = vpop.f32.mrb[0].mxu0
        %v386 = vadd.f32 %v313, %v385
        %v387 = vpop.f32.mrb[0].mxu0
        %v388 = vadd.f32 %v313, %v387
        %389 = vdwg.mxu0
        %v390 = vmax.f32 %v386, 0.0
        %v391 = vmax.f32 %v388, 0.0
        %394 = vrot.lane.b32.xlu0 %v390, 17
        %v395 = vpop.permute.xlu0 %394
        %396 = vrot.lane.b32.xlu0 %v391, 17
        %v397 = vpop.permute.xlu0 %396
        %vm398 = vcmask 138240
        %v399 = vsel %vm398, %v395, %v397
        %v402 = vsel %vm398, 0.0, %v395
        %v403 = vsel %vm398, %v397, 0.0
        %v404 = vld [vmem:[%s7] sm:$0xf]
        %v405 = vld [vmem:[%s3] sm:$0xf]
        %s406 = scalar_lea.vmem %s3, 12
        %v407 = vld [vmem:[%s406] sm:$0xf]
        %410 = vrot.lane.b32.xlu0 %v402, 112
        %v411 = vpop.permute.xlu0 %410
        %412 = vrot.lane.b32.xlu0 %v399, 112
        %v413 = vpop.permute.xlu0 %412
        %414 = vrot.lane.b32.xlu0 %v403, 112
        %v415 = vpop.permute.xlu0 %414
        %vm416 = vcmask 916480
        %v417 = vsel %vm416, %v411, %v413
        %v418 = vsel %vm416, %v413, %v415
        %vm419 = vcmask 31744
        %v421 = vsel %vm419, %v407, 0
        %vm423 = vcmask 1043456
        %v424 = vsel %vm423, %v417, 0
        %v426 = vsel %vm423, %v418, 0
        %428 = vmatprep.subr.mxu0 %v426
        %429 = vmatpush1.msra.mxu0 %v424
        %430 = vmatprep.subr.mxu0 0.0
        %431 = vmatpush1.msra.mxu0 0.0
        %432 = vmatprep.subr.mxu0 0.0
        %433 = vmatpush1.msra.mxu0 0.0
        %434 = vmatprep.subr.mxu0 0.0
        %435 = vmatpush1.msra.mxu0 0.0
        %436 = vmatprep.subr.mxu0 0.0
        %437 = vmatpush1.msra.mxu0 0.0
        %438 = vmatprep.subr.mxu0 0.0
        %439 = vmatpush1.msra.mxu0 0.0
        %440 = vmatprep.subr.mxu0 0.0
        %441 = vmatpush1.msra.mxu0 0.0
        %442 = vmatprep.subr.mxu0 0.0
        %443 = vmatpush1.msra.mxu0 0.0
        %444 = vmatprep.subr.mxu0 0.0
        %445 = vmatpush1.msra.mxu0 0.0
        %446 = vmatprep.subr.mxu0 0.0
        %447 = vmatpush1.msra.mxu0 0.0
        %448 = vmatprep.subr.mxu0 0.0
        %449 = vmatpush1.msra.mxu0 0.0
        %450 = vmatprep.subr.mxu0 0.0
        %451 = vmatpush1.msra.mxu0 0.0
        %452 = vmatprep.subr.mxu0 0.0
        %453 = vmatpush1.msra.mxu0 0.0
        %454 = vmatprep.subr.mxu0 0.0
        %455 = vmatpush1.msra.mxu0 0.0
        %456 = vmatprep.subr.mxu0 0.0
        %457 = vmatpush1.msra.mxu0 0.0
        %458 = vmatprep.subr.mxu0 0.0
        %459 = vmatpush1.msra.mxu0 0.0
        %460 = vmatprep.subr.mxu0 0.0
        %461 = vmatpush1.msra.mxu0 0.0
        %462 = vmatprep.subr.mxu0 0.0
        %463 = vmatpush1.msra.mxu0 0.0
        %464 = vmatprep.subr.mxu0 0.0
        %465 = vmatpush1.msra.mxu0 0.0
        %466 = vmatprep.subr.mxu0 0.0
        %467 = vmatpush1.msra.mxu0 0.0
        %468 = vmatprep.subr.mxu0 0.0
        %469 = vmatpush1.msra.mxu0 0.0
        %470 = vmatprep.subr.mxu0 0.0
        %471 = vmatpush1.msra.mxu0 0.0
        %472 = vmatprep.subr.mxu0 0.0
        %473 = vmatpush1.msra.mxu0 0.0
        %474 = vmatprep.subr.mxu0 0.0
        %475 = vmatpush1.msra.mxu0 0.0
        %476 = vmatprep.subr.mxu0 0.0
        %477 = vmatpush1.msra.mxu0 0.0
        %478 = vmatprep.subr.mxu0 0.0
        %479 = vmatpush1.msra.mxu0 0.0
        %480 = vmatprep.subr.mxu0 0.0
        %481 = vmatpush1.msra.mxu0 0.0
        %482 = vmatprep.subr.mxu0 0.0
        %483 = vmatpush1.msra.mxu0 0.0
        %484 = vmatprep.subr.mxu0 0.0
        %485 = vmatpush1.msra.mxu0 0.0
        %486 = vmatprep.subr.mxu0 0.0
        %487 = vmatpush1.msra.mxu0 0.0
        %488 = vmatprep.subr.mxu0 0.0
        %489 = vmatpush1.msra.mxu0 0.0
        %490 = vmatprep.subr.mxu0 0.0
        %491 = vmatpush1.msra.mxu0 0.0
        %492 = vmatprep.mubr.f32.mxu0 0.0
        %493 = vmatmul.mubr.f32.gmra.mrb[0].mxu0 %v421
        %v494 = vpop.f32.mrb[0].mxu0
        %v495 = vadd.f32 0.0, %v494
        %v496 = vpop.f32.mrb[0].mxu0
        %v497 = vadd.f32 0.0, %v496
        %498 = vdwg.mxu0
        %v500 = vsel %vm419, %v405, 0
        %v502 = vsel %vm423, %v402, 0
        %v504 = vsel %vm423, %v399, 0
        %506 = vmatprep.subr.mxu0 %v504
        %507 = vmatpush1.msra.mxu0 %v502
        %508 = vmatprep.subr.mxu0 0.0
        %509 = vmatpush1.msra.mxu0 0.0
        %510 = vmatprep.subr.mxu0 0.0
        %511 = vmatpush1.msra.mxu0 0.0
        %512 = vmatprep.subr.mxu0 0.0
        %513 = vmatpush1.msra.mxu0 0.0
        %514 = vmatprep.subr.mxu0 0.0
        %515 = vmatpush1.msra.mxu0 0.0
        %516 = vmatprep.subr.mxu0 0.0
        %517 = vmatpush1.msra.mxu0 0.0
        %518 = vmatprep.subr.mxu0 0.0
        %519 = vmatpush1.msra.mxu0 0.0
        %520 = vmatprep.subr.mxu0 0.0
        %521 = vmatpush1.msra.mxu0 0.0
        %522 = vmatprep.subr.mxu0 0.0
        %523 = vmatpush1.msra.mxu0 0.0
        %524 = vmatprep.subr.mxu0 0.0
        %525 = vmatpush1.msra.mxu0 0.0
        %526 = vmatprep.subr.mxu0 0.0
        %527 = vmatpush1.msra.mxu0 0.0
        %528 = vmatprep.subr.mxu0 0.0
        %529 = vmatpush1.msra.mxu0 0.0
        %530 = vmatprep.subr.mxu0 0.0
        %531 = vmatpush1.msra.mxu0 0.0
        %532 = vmatprep.subr.mxu0 0.0
        %533 = vmatpush1.msra.mxu0 0.0
        %534 = vmatprep.subr.mxu0 0.0
        %535 = vmatpush1.msra.mxu0 0.0
        %536 = vmatprep.subr.mxu0 0.0
        %537 = vmatpush1.msra.mxu0 0.0
        %538 = vmatprep.subr.mxu0 0.0
        %539 = vmatpush1.msra.mxu0 0.0
        %540 = vmatprep.subr.mxu0 0.0
        %541 = vmatpush1.msra.mxu0 0.0
        %542 = vmatprep.subr.mxu0 0.0
        %543 = vmatpush1.msra.mxu0 0.0
        %544 = vmatprep.subr.mxu0 0.0
        %545 = vmatpush1.msra.mxu0 0.0
        %546 = vmatprep.subr.mxu0 0.0
        %547 = vmatpush1.msra.mxu0 0.0
        %548 = vmatprep.subr.mxu0 0.0
        %549 = vmatpush1.msra.mxu0 0.0
        %550 = vmatprep.subr.mxu0 0.0
        %551 = vmatpush1.msra.mxu0 0.0
        %552 = vmatprep.subr.mxu0 0.0
        %553 = vmatpush1.msra.mxu0 0.0
        %554 = vmatprep.subr.mxu0 0.0
        %555 = vmatpush1.msra.mxu0 0.0
        %556 = vmatprep.subr.mxu0 0.0
        %557 = vmatpush1.msra.mxu0 0.0
        %558 = vmatprep.subr.mxu0 0.0
        %559 = vmatpush1.msra.mxu0 0.0
        %560 = vmatprep.subr.mxu0 0.0
        %561 = vmatpush1.msra.mxu0 0.0
        %562 = vmatprep.subr.mxu0 0.0
        %563 = vmatpush1.msra.mxu0 0.0
        %564 = vmatprep.subr.mxu0 0.0
        %565 = vmatpush1.msra.mxu0 0.0
        %566 = vmatprep.subr.mxu0 0.0
        %567 = vmatpush1.msra.mxu0 0.0
        %568 = vmatprep.subr.mxu0 0.0
        %569 = vmatpush1.msra.mxu0 0.0
        %570 = vmatprep.mubr.f32.mxu0 0.0
        %571 = vmatmul.mubr.f32.gmra.mrb[0].mxu0 %v500
        %v572 = vpop.f32.mrb[0].mxu0
        %v573 = vadd.f32 %v495, %v572
        %v574 = vpop.f32.mrb[0].mxu0
        %v575 = vadd.f32 %v497, %v574
        %576 = vdwg.mxu0
        %s577 = scalar_lea.vmem %s3, 24
        %v578 = vld [vmem:[%s577] sm:$0xf]
        %579 = vrot.lane.b32.xlu0 %v402, 96
        %v580 = vpop.permute.xlu0 %579
        %581 = vrot.lane.b32.xlu0 %v399, 96
        %v582 = vpop.permute.xlu0 %581
        %583 = vrot.lane.b32.xlu0 %v403, 96
        %v584 = vpop.permute.xlu0 %583
        %vm585 = vcmask 785408
        %v586 = vsel %vm585, %v580, %v582
        %v587 = vsel %vm585, %v582, %v584
        %v589 = vsel %vm419, %v578, 0
        %v591 = vsel %vm423, %v586, 0
        %v593 = vsel %vm423, %v587, 0
        %595 = vmatprep.subr.mxu0 %v593
        %596 = vmatpush1.msra.mxu0 %v591
        %597 = vmatprep.subr.mxu0 0.0
        %598 = vmatpush1.msra.mxu0 0.0
        %599 = vmatprep.subr.mxu0 0.0
        %600 = vmatpush1.msra.mxu0 0.0
        %601 = vmatprep.subr.mxu0 0.0
        %602 = vmatpush1.msra.mxu0 0.0
        %603 = vmatprep.subr.mxu0 0.0
        %604 = vmatpush1.msra.mxu0 0.0
        %605 = vmatprep.subr.mxu0 0.0
        %606 = vmatpush1.msra.mxu0 0.0
        %607 = vmatprep.subr.mxu0 0.0
        %608 = vmatpush1.msra.mxu0 0.0
        %609 = vmatprep.subr.mxu0 0.0
        %610 = vmatpush1.msra.mxu0 0.0
        %611 = vmatprep.subr.mxu0 0.0
        %612 = vmatpush1.msra.mxu0 0.0
        %613 = vmatprep.subr.mxu0 0.0
        %614 = vmatpush1.msra.mxu0 0.0
        %615 = vmatprep.subr.mxu0 0.0
        %616 = vmatpush1.msra.mxu0 0.0
        %617 = vmatprep.subr.mxu0 0.0
        %618 = vmatpush1.msra.mxu0 0.0
        %619 = vmatprep.subr.mxu0 0.0
        %620 = vmatpush1.msra.mxu0 0.0
        %621 = vmatprep.subr.mxu0 0.0
        %622 = vmatpush1.msra.mxu0 0.0
        %623 = vmatprep.subr.mxu0 0.0
        %624 = vmatpush1.msra.mxu0 0.0
        %625 = vmatprep.subr.mxu0 0.0
        %626 = vmatpush1.msra.mxu0 0.0
        %627 = vmatprep.subr.mxu0 0.0
        %628 = vmatpush1.msra.mxu0 0.0
        %629 = vmatprep.subr.mxu0 0.0
        %630 = vmatpush1.msra.mxu0 0.0
        %631 = vmatprep.subr.mxu0 0.0
        %632 = vmatpush1.msra.mxu0 0.0
        %633 = vmatprep.subr.mxu0 0.0
        %634 = vmatpush1.msra.mxu0 0.0
        %635 = vmatprep.subr.mxu0 0.0
        %636 = vmatpush1.msra.mxu0 0.0
        %637 = vmatprep.subr.mxu0 0.0
        %638 = vmatpush1.msra.mxu0 0.0
        %639 = vmatprep.subr.mxu0 0.0
        %640 = vmatpush1.msra.mxu0 0.0
        %641 = vmatprep.subr.mxu0 0.0
        %642 = vmatpush1.msra.mxu0 0.0
        %643 = vmatprep.subr.mxu0 0.0
        %644 = vmatpush1.msra.mxu0 0.0
        %645 = vmatprep.subr.mxu0 0.0
        %646 = vmatpush1.msra.mxu0 0.0
        %647 = vmatprep.subr.mxu0 0.0
        %648 = vmatpush1.msra.mxu0 0.0
        %649 = vmatprep.subr.mxu0 0.0
        %650 = vmatpush1.msra.mxu0 0.0
        %651 = vmatprep.subr.mxu0 0.0
        %652 = vmatpush1.msra.mxu0 0.0
        %653 = vmatprep.subr.mxu0 0.0
        %654 = vmatpush1.msra.mxu0 0.0
        %655 = vmatprep.subr.mxu0 0.0
        %656 = vmatpush1.msra.mxu0 0.0
        %657 = vmatprep.subr.mxu0 0.0
        %658 = vmatpush1.msra.mxu0 0.0
        %659 = vmatprep.mubr.f32.mxu0 0.0
        %660 = vmatmul.mubr.f32.gmra.mrb[0].mxu0 %v589
        %v661 = vpop.f32.mrb[0].mxu0
        %v662 = vadd.f32 0.0, %v661
        %v663 = vpop.f32.mrb[0].mxu0
        %v664 = vadd.f32 0.0, %v663
        %665 = vdwg.mxu0
        %v666 = vadd.f32 %v573, %v662
        %v667 = vadd.f32 %v575, %v664
        %v669 = vlaneseq
        %v670 = vshrl.u32 %v669, 7
        %v671 = vsub.s32 0, %v670
        %v672 = vrot.slane %v404, %v671
        %v673 = vlaneseq
        %v674 = vshrl.u32 %v673, 7
        %v675 = vsub.s32 2, %v674
        %v676 = vrot.slane %v404, %v675
        %v679 = vlaneseq
        %v680 = vshrl.u32 %v679, 7
        %v681 = vsub.s32 0, %v680
        %v682 = vrot.slane %v672, %v681
        %v683 = vlaneseq
        %v684 = vshrl.u32 %v683, 7
        %v685 = vsub.s32 0, %v684
        %v686 = vrot.slane %v676, %v685
        %v687 = vmul.f32 %v666, %v682
        %v688 = vmul.f32 %v667, %v686
        %s689 = scalar_lea.vmem %s3, 4
        %v690 = vld [vmem:[%s689] sm:$0xf]
        %s691 = scalar_lea.vmem %s3, 16
        %v692 = vld [vmem:[%s691] sm:$0xf]
        %693 = vrot.lane.b32.xlu0 %v402, 111
        %v694 = vpop.permute.xlu0 %693
        %695 = vrot.lane.b32.xlu0 %v399, 111
        %v696 = vpop.permute.xlu0 %695
        %697 = vrot.lane.b32.xlu0 %v403, 111
        %v698 = vpop.permute.xlu0 %697
        %vm699 = vcmask 908288
        %v700 = vsel %vm699, %v694, %v696
        %v701 = vsel %vm699, %v696, %v698
        %v703 = vsel %vm419, %v692, 0
        %v705 = vsel %vm423, %v700, 0
        %v707 = vsel %vm423, %v701, 0
        %709 = vmatprep.subr.mxu0 %v707
        %710 = vmatpush1.msra.mxu0 %v705
        %711 = vmatprep.subr.mxu0 0.0
        %712 = vmatpush1.msra.mxu0 0.0
        %713 = vmatprep.subr.mxu0 0.0
        %714 = vmatpush1.msra.mxu0 0.0
        %715 = vmatprep.subr.mxu0 0.0
        %716 = vmatpush1.msra.mxu0 0.0
        %717 = vmatprep.subr.mxu0 0.0
        %718 = vmatpush1.msra.mxu0 0.0
        %719 = vmatprep.subr.mxu0 0.0
        %720 = vmatpush1.msra.mxu0 0.0
        %721 = vmatprep.subr.mxu0 0.0
        %722 = vmatpush1.msra.mxu0 0.0
        %723 = vmatprep.subr.mxu0 0.0
        %724 = vmatpush1.msra.mxu0 0.0
        %725 = vmatprep.subr.mxu0 0.0
        %726 = vmatpush1.msra.mxu0 0.0
        %727 = vmatprep.subr.mxu0 0.0
        %728 = vmatpush1.msra.mxu0 0.0
        %729 = vmatprep.subr.mxu0 0.0
        %730 = vmatpush1.msra.mxu0 0.0
        %731 = vmatprep.subr.mxu0 0.0
        %732 = vmatpush1.msra.mxu0 0.0
        %733 = vmatprep.subr.mxu0 0.0
        %734 = vmatpush1.msra.mxu0 0.0
        %735 = vmatprep.subr.mxu0 0.0
        %736 = vmatpush1.msra.mxu0 0.0
        %737 = vmatprep.subr.mxu0 0.0
        %738 = vmatpush1.msra.mxu0 0.0
        %739 = vmatprep.subr.mxu0 0.0
        %740 = vmatpush1.msra.mxu0 0.0
        %741 = vmatprep.subr.mxu0 0.0
        %742 = vmatpush1.msra.mxu0 0.0
        %743 = vmatprep.subr.mxu0 0.0
        %744 = vmatpush1.msra.mxu0 0.0
        %745 = vmatprep.subr.mxu0 0.0
        %746 = vmatpush1.msra.mxu0 0.0
        %747 = vmatprep.subr.mxu0 0.0
        %748 = vmatpush1.msra.mxu0 0.0
        %749 = vmatprep.subr.mxu0 0.0
        %750 = vmatpush1.msra.mxu0 0.0
        %751 = vmatprep.subr.mxu0 0.0
        %752 = vmatpush1.msra.mxu0 0.0
        %753 = vmatprep.subr.mxu0 0.0
        %754 = vmatpush1.msra.mxu0 0.0
        %755 = vmatprep.subr.mxu0 0.0
        %756 = vmatpush1.msra.mxu0 0.0
        %757 = vmatprep.subr.mxu0 0.0
        %758 = vmatpush1.msra.mxu0 0.0
        %759 = vmatprep.subr.mxu0 0.0
        %760 = vmatpush1.msra.mxu0 0.0
        %761 = vmatprep.subr.mxu0 0.0
        %762 = vmatpush1.msra.mxu0 0.0
        %763 = vmatprep.subr.mxu0 0.0
        %764 = vmatpush1.msra.mxu0 0.0
        %765 = vmatprep.subr.mxu0 0.0
        %766 = vmatpush1.msra.mxu0 0.0
        %767 = vmatprep.subr.mxu0 0.0
        %768 = vmatpush1.msra.mxu0 0.0
        %769 = vmatprep.subr.mxu0 0.0
        %770 = vmatpush1.msra.mxu0 0.0
        %771 = vmatprep.subr.mxu0 0.0
        %772 = vmatpush1.msra.mxu0 0.0
        %773 = vmatprep.mubr.f32.mxu0 0.0
        %774 = vmatmul.mubr.f32.gmra.mrb[0].mxu0 %v703
        %v775 = vpop.f32.mrb[0].mxu0
        %v776 = vadd.f32 0.0, %v775
        %v777 = vpop.f32.mrb[0].mxu0
        %v778 = vadd.f32 0.0, %v777
        %779 = vdwg.mxu0
        %780 = vrot.lane.b32.xlu0 %v402, 127
        %v781 = vpop.permute.xlu0 %780
        %782 = vrot.lane.b32.xlu0 %v399, 127
        %v783 = vpop.permute.xlu0 %782
        %784 = vrot.lane.b32.xlu0 %v403, 127
        %v785 = vpop.permute.xlu0 %784
        %vm786 = vcmask 1039360
        %v787 = vsel %vm786, %v781, %v783
        %v788 = vsel %vm786, %v783, %v785
        %v790 = vsel %vm419, %v690, 0
        %v792 = vsel %vm423, %v787, 0
        %v794 = vsel %vm423, %v788, 0
        %796 = vmatprep.subr.mxu0 %v794
        %797 = vmatpush1.msra.mxu0 %v792
        %798 = vmatprep.subr.mxu0 0.0
        %799 = vmatpush1.msra.mxu0 0.0
        %800 = vmatprep.subr.mxu0 0.0
        %801 = vmatpush1.msra.mxu0 0.0
        %802 = vmatprep.subr.mxu0 0.0
        %803 = vmatpush1.msra.mxu0 0.0
        %804 = vmatprep.subr.mxu0 0.0
        %805 = vmatpush1.msra.mxu0 0.0
        %806 = vmatprep.subr.mxu0 0.0
        %807 = vmatpush1.msra.mxu0 0.0
        %808 = vmatprep.subr.mxu0 0.0
        %809 = vmatpush1.msra.mxu0 0.0
        %810 = vmatprep.subr.mxu0 0.0
        %811 = vmatpush1.msra.mxu0 0.0
        %812 = vmatprep.subr.mxu0 0.0
        %813 = vmatpush1.msra.mxu0 0.0
        %814 = vmatprep.subr.mxu0 0.0
        %815 = vmatpush1.msra.mxu0 0.0
        %816 = vmatprep.subr.mxu0 0.0
        %817 = vmatpush1.msra.mxu0 0.0
        %818 = vmatprep.subr.mxu0 0.0
        %819 = vmatpush1.msra.mxu0 0.0
        %820 = vmatprep.subr.mxu0 0.0
        %821 = vmatpush1.msra.mxu0 0.0
        %822 = vmatprep.subr.mxu0 0.0
        %823 = vmatpush1.msra.mxu0 0.0
        %824 = vmatprep.subr.mxu0 0.0
        %825 = vmatpush1.msra.mxu0 0.0
        %826 = vmatprep.subr.mxu0 0.0
        %827 = vmatpush1.msra.mxu0 0.0
        %828 = vmatprep.subr.mxu0 0.0
        %829 = vmatpush1.msra.mxu0 0.0
        %830 = vmatprep.subr.mxu0 0.0
        %831 = vmatpush1.msra.mxu0 0.0
        %832 = vmatprep.subr.mxu0 0.0
        %833 = vmatpush1.msra.mxu0 0.0
        %834 = vmatprep.subr.mxu0 0.0
        %835 = vmatpush1.msra.mxu0 0.0
        %836 = vmatprep.subr.mxu0 0.0
        %837 = vmatpush1.msra.mxu0 0.0
        %838 = vmatprep.subr.mxu0 0.0
        %839 = vmatpush1.msra.mxu0 0.0
        %840 = vmatprep.subr.mxu0 0.0
        %841 = vmatpush1.msra.mxu0 0.0
        %842 = vmatprep.subr.mxu0 0.0
        %843 = vmatpush1.msra.mxu0 0.0
        %844 = vmatprep.subr.mxu0 0.0
        %845 = vmatpush1.msra.mxu0 0.0
        %846 = vmatprep.subr.mxu0 0.0
        %847 = vmatpush1.msra.mxu0 0.0
        %848 = vmatprep.subr.mxu0 0.0
        %849 = vmatpush1.msra.mxu0 0.0
        %850 = vmatprep.subr.mxu0 0.0
        %851 = vmatpush1.msra.mxu0 0.0
        %852 = vmatprep.subr.mxu0 0.0
        %853 = vmatpush1.msra.mxu0 0.0
        %854 = vmatprep.subr.mxu0 0.0
        %855 = vmatpush1.msra.mxu0 0.0
        %856 = vmatprep.subr.mxu0 0.0
        %857 = vmatpush1.msra.mxu0 0.0
        %858 = vmatprep.subr.mxu0 0.0
        %859 = vmatpush1.msra.mxu0 0.0
        %860 = vmatprep.mubr.f32.mxu0 0.0
        %861 = vmatmul.mubr.f32.gmra.mrb[0].mxu0 %v790
        %v862 = vpop.f32.mrb[0].mxu0
        %v863 = vadd.f32 %v776, %v862
        %v864 = vpop.f32.mrb[0].mxu0
        %v865 = vadd.f32 %v778, %v864
        %866 = vdwg.mxu0
        %s867 = scalar_lea.vmem %s3, 28
        %v868 = vld [vmem:[%s867] sm:$0xf]
        %869 = vrot.lane.b32.xlu0 %v402, 95
        %v870 = vpop.permute.xlu0 %869
        %871 = vrot.lane.b32.xlu0 %v399, 95
        %v872 = vpop.permute.xlu0 %871
        %873 = vrot.lane.b32.xlu0 %v403, 95
        %v874 = vpop.permute.xlu0 %873
        %vm875 = vcmask 777216
        %v876 = vsel %vm875, %v870, %v872
        %v877 = vsel %vm875, %v872, %v874
        %v879 = vsel %vm419, %v868, 0
        %v881 = vsel %vm423, %v876, 0
        %v883 = vsel %vm423, %v877, 0
        %885 = vmatprep.subr.mxu0 %v883
        %886 = vmatpush1.msra.mxu0 %v881
        %887 = vmatprep.subr.mxu0 0.0
        %888 = vmatpush1.msra.mxu0 0.0
        %889 = vmatprep.subr.mxu0 0.0
        %890 = vmatpush1.msra.mxu0 0.0
        %891 = vmatprep.subr.mxu0 0.0
        %892 = vmatpush1.msra.mxu0 0.0
        %893 = vmatprep.subr.mxu0 0.0
        %894 = vmatpush1.msra.mxu0 0.0
        %895 = vmatprep.subr.mxu0 0.0
        %896 = vmatpush1.msra.mxu0 0.0
        %897 = vmatprep.subr.mxu0 0.0
        %898 = vmatpush1.msra.mxu0 0.0
        %899 = vmatprep.subr.mxu0 0.0
        %900 = vmatpush1.msra.mxu0 0.0
        %901 = vmatprep.subr.mxu0 0.0
        %902 = vmatpush1.msra.mxu0 0.0
        %903 = vmatprep.subr.mxu0 0.0
        %904 = vmatpush1.msra.mxu0 0.0
        %905 = vmatprep.subr.mxu0 0.0
        %906 = vmatpush1.msra.mxu0 0.0
        %907 = vmatprep.subr.mxu0 0.0
        %908 = vmatpush1.msra.mxu0 0.0
        %909 = vmatprep.subr.mxu0 0.0
        %910 = vmatpush1.msra.mxu0 0.0
        %911 = vmatprep.subr.mxu0 0.0
        %912 = vmatpush1.msra.mxu0 0.0
        %913 = vmatprep.subr.mxu0 0.0
        %914 = vmatpush1.msra.mxu0 0.0
        %915 = vmatprep.subr.mxu0 0.0
        %916 = vmatpush1.msra.mxu0 0.0
        %917 = vmatprep.subr.mxu0 0.0
        %918 = vmatpush1.msra.mxu0 0.0
        %919 = vmatprep.subr.mxu0 0.0
        %920 = vmatpush1.msra.mxu0 0.0
        %921 = vmatprep.subr.mxu0 0.0
        %922 = vmatpush1.msra.mxu0 0.0
        %923 = vmatprep.subr.mxu0 0.0
        %924 = vmatpush1.msra.mxu0 0.0
        %925 = vmatprep.subr.mxu0 0.0
        %926 = vmatpush1.msra.mxu0 0.0
        %927 = vmatprep.subr.mxu0 0.0
        %928 = vmatpush1.msra.mxu0 0.0
        %929 = vmatprep.subr.mxu0 0.0
        %930 = vmatpush1.msra.mxu0 0.0
        %931 = vmatprep.subr.mxu0 0.0
        %932 = vmatpush1.msra.mxu0 0.0
        %933 = vmatprep.subr.mxu0 0.0
        %934 = vmatpush1.msra.mxu0 0.0
        %935 = vmatprep.subr.mxu0 0.0
        %936 = vmatpush1.msra.mxu0 0.0
        %937 = vmatprep.subr.mxu0 0.0
        %938 = vmatpush1.msra.mxu0 0.0
        %939 = vmatprep.subr.mxu0 0.0
        %940 = vmatpush1.msra.mxu0 0.0
        %941 = vmatprep.subr.mxu0 0.0
        %942 = vmatpush1.msra.mxu0 0.0
        %943 = vmatprep.subr.mxu0 0.0
        %944 = vmatpush1.msra.mxu0 0.0
        %945 = vmatprep.subr.mxu0 0.0
        %946 = vmatpush1.msra.mxu0 0.0
        %947 = vmatprep.subr.mxu0 0.0
        %948 = vmatpush1.msra.mxu0 0.0
        %949 = vmatprep.mubr.f32.mxu0 0.0
        %950 = vmatmul.mubr.f32.gmra.mrb[0].mxu0 %v879
        %v951 = vpop.f32.mrb[0].mxu0
        %v952 = vadd.f32 0.0, %v951
        %v953 = vpop.f32.mrb[0].mxu0
        %v954 = vadd.f32 0.0, %v953
        %955 = vdwg.mxu0
        %v956 = vadd.f32 %v863, %v952
        %v957 = vadd.f32 %v865, %v954
        %v958 = vadd.f32 %v687, %v956
        %v959 = vadd.f32 %v688, %v957
        %s960 = scalar_lea.vmem %s3, 8
        %v961 = vld [vmem:[%s960] sm:$0xf]
        %s962 = scalar_lea.vmem %s3, 20
        %v963 = vld [vmem:[%s962] sm:$0xf]
        %964 = vrot.lane.b32.xlu0 %v402, 110
        %v965 = vpop.permute.xlu0 %964
        %966 = vrot.lane.b32.xlu0 %v399, 110
        %v967 = vpop.permute.xlu0 %966
        %968 = vrot.lane.b32.xlu0 %v403, 110
        %v969 = vpop.permute.xlu0 %968
        %vm970 = vcmask 900096
        %v971 = vsel %vm970, %v965, %v967
        %v972 = vsel %vm970, %v967, %v969
        %v974 = vsel %vm419, %v963, 0
        %v976 = vsel %vm423, %v971, 0
        %v978 = vsel %vm423, %v972, 0
        %980 = vmatprep.subr.mxu0 %v978
        %981 = vmatpush1.msra.mxu0 %v976
        %982 = vmatprep.subr.mxu0 0.0
        %983 = vmatpush1.msra.mxu0 0.0
        %984 = vmatprep.subr.mxu0 0.0
        %985 = vmatpush1.msra.mxu0 0.0
        %986 = vmatprep.subr.mxu0 0.0
        %987 = vmatpush1.msra.mxu0 0.0
        %988 = vmatprep.subr.mxu0 0.0
        %989 = vmatpush1.msra.mxu0 0.0
        %990 = vmatprep.subr.mxu0 0.0
        %991 = vmatpush1.msra.mxu0 0.0
        %992 = vmatprep.subr.mxu0 0.0
        %993 = vmatpush1.msra.mxu0 0.0
        %994 = vmatprep.subr.mxu0 0.0
        %995 = vmatpush1.msra.mxu0 0.0
        %996 = vmatprep.subr.mxu0 0.0
        %997 = vmatpush1.msra.mxu0 0.0
        %998 = vmatprep.subr.mxu0 0.0
        %999 = vmatpush1.msra.mxu0 0.0
        %1000 = vmatprep.subr.mxu0 0.0
        %1001 = vmatpush1.msra.mxu0 0.0
        %1002 = vmatprep.subr.mxu0 0.0
        %1003 = vmatpush1.msra.mxu0 0.0
        %1004 = vmatprep.subr.mxu0 0.0
        %1005 = vmatpush1.msra.mxu0 0.0
        %1006 = vmatprep.subr.mxu0 0.0
        %1007 = vmatpush1.msra.mxu0 0.0
        %1008 = vmatprep.subr.mxu0 0.0
        %1009 = vmatpush1.msra.mxu0 0.0
        %1010 = vmatprep.subr.mxu0 0.0
        %1011 = vmatpush1.msra.mxu0 0.0
        %1012 = vmatprep.subr.mxu0 0.0
        %1013 = vmatpush1.msra.mxu0 0.0
        %1014 = vmatprep.subr.mxu0 0.0
        %1015 = vmatpush1.msra.mxu0 0.0
        %1016 = vmatprep.subr.mxu0 0.0
        %1017 = vmatpush1.msra.mxu0 0.0
        %1018 = vmatprep.subr.mxu0 0.0
        %1019 = vmatpush1.msra.mxu0 0.0
        %1020 = vmatprep.subr.mxu0 0.0
        %1021 = vmatpush1.msra.mxu0 0.0
        %1022 = vmatprep.subr.mxu0 0.0
        %1023 = vmatpush1.msra.mxu0 0.0
        %1024 = vmatprep.subr.mxu0 0.0
        %1025 = vmatpush1.msra.mxu0 0.0
        %1026 = vmatprep.subr.mxu0 0.0
        %1027 = vmatpush1.msra.mxu0 0.0
        %1028 = vmatprep.subr.mxu0 0.0
        %1029 = vmatpush1.msra.mxu0 0.0
        %1030 = vmatprep.subr.mxu0 0.0
        %1031 = vmatpush1.msra.mxu0 0.0
        %1032 = vmatprep.subr.mxu0 0.0
        %1033 = vmatpush1.msra.mxu0 0.0
        %1034 = vmatprep.subr.mxu0 0.0
        %1035 = vmatpush1.msra.mxu0 0.0
        %1036 = vmatprep.subr.mxu0 0.0
        %1037 = vmatpush1.msra.mxu0 0.0
        %1038 = vmatprep.subr.mxu0 0.0
        %1039 = vmatpush1.msra.mxu0 0.0
        %1040 = vmatprep.subr.mxu0 0.0
        %1041 = vmatpush1.msra.mxu0 0.0
        %1042 = vmatprep.subr.mxu0 0.0
        %1043 = vmatpush1.msra.mxu0 0.0
        %1044 = vmatprep.mubr.f32.mxu0 0.0
        %1045 = vmatmul.mubr.f32.gmra.mrb[0].mxu0 %v974
        %v1046 = vpop.f32.mrb[0].mxu0
        %v1047 = vadd.f32 0.0, %v1046
        %v1048 = vpop.f32.mrb[0].mxu0
        %v1049 = vadd.f32 0.0, %v1048
        %1050 = vdwg.mxu0
        %1051 = vrot.lane.b32.xlu0 %v402, 126
        %v1052 = vpop.permute.xlu0 %1051
        %1053 = vrot.lane.b32.xlu0 %v399, 126
        %v1054 = vpop.permute.xlu0 %1053
        %1055 = vrot.lane.b32.xlu0 %v403, 126
        %v1056 = vpop.permute.xlu0 %1055
        %vm1057 = vcmask 1031168
        %v1058 = vsel %vm1057, %v1052, %v1054
        %v1059 = vsel %vm1057, %v1054, %v1056
        %v1061 = vsel %vm419, %v961, 0
        %v1063 = vsel %vm423, %v1058, 0
        %v1065 = vsel %vm423, %v1059, 0
        %1067 = vmatprep.subr.mxu0 %v1065
        %1068 = vmatpush1.msra.mxu0 %v1063
        %1069 = vmatprep.subr.mxu0 0.0
        %1070 = vmatpush1.msra.mxu0 0.0
        %1071 = vmatprep.subr.mxu0 0.0
        %1072 = vmatpush1.msra.mxu0 0.0
        %1073 = vmatprep.subr.mxu0 0.0
        %1074 = vmatpush1.msra.mxu0 0.0
        %1075 = vmatprep.subr.mxu0 0.0
        %1076 = vmatpush1.msra.mxu0 0.0
        %1077 = vmatprep.subr.mxu0 0.0
        %1078 = vmatpush1.msra.mxu0 0.0
        %1079 = vmatprep.subr.mxu0 0.0
        %1080 = vmatpush1.msra.mxu0 0.0
        %1081 = vmatprep.subr.mxu0 0.0
        %1082 = vmatpush1.msra.mxu0 0.0
        %1083 = vmatprep.subr.mxu0 0.0
        %1084 = vmatpush1.msra.mxu0 0.0
        %1085 = vmatprep.subr.mxu0 0.0
        %1086 = vmatpush1.msra.mxu0 0.0
        %1087 = vmatprep.subr.mxu0 0.0
        %1088 = vmatpush1.msra.mxu0 0.0
        %1089 = vmatprep.subr.mxu0 0.0
        %1090 = vmatpush1.msra.mxu0 0.0
        %1091 = vmatprep.subr.mxu0 0.0
        %1092 = vmatpush1.msra.mxu0 0.0
        %1093 = vmatprep.subr.mxu0 0.0
        %1094 = vmatpush1.msra.mxu0 0.0
        %1095 = vmatprep.subr.mxu0 0.0
        %1096 = vmatpush1.msra.mxu0 0.0
        %1097 = vmatprep.subr.mxu0 0.0
        %1098 = vmatpush1.msra.mxu0 0.0
        %1099 = vmatprep.subr.mxu0 0.0
        %1100 = vmatpush1.msra.mxu0 0.0
        %1101 = vmatprep.subr.mxu0 0.0
        %1102 = vmatpush1.msra.mxu0 0.0
        %1103 = vmatprep.subr.mxu0 0.0
        %1104 = vmatpush1.msra.mxu0 0.0
        %1105 = vmatprep.subr.mxu0 0.0
        %1106 = vmatpush1.msra.mxu0 0.0
        %1107 = vmatprep.subr.mxu0 0.0
        %1108 = vmatpush1.msra.mxu0 0.0
        %1109 = vmatprep.subr.mxu0 0.0
        %1110 = vmatpush1.msra.mxu0 0.0
        %1111 = vmatprep.subr.mxu0 0.0
        %1112 = vmatpush1.msra.mxu0 0.0
        %1113 = vmatprep.subr.mxu0 0.0
        %1114 = vmatpush1.msra.mxu0 0.0
        %1115 = vmatprep.subr.mxu0 0.0
        %1116 = vmatpush1.msra.mxu0 0.0
        %1117 = vmatprep.subr.mxu0 0.0
        %1118 = vmatpush1.msra.mxu0 0.0
        %1119 = vmatprep.subr.mxu0 0.0
        %1120 = vmatpush1.msra.mxu0 0.0
        %1121 = vmatprep.subr.mxu0 0.0
        %1122 = vmatpush1.msra.mxu0 0.0
        %1123 = vmatprep.subr.mxu0 0.0
        %1124 = vmatpush1.msra.mxu0 0.0
        %1125 = vmatprep.subr.mxu0 0.0
        %1126 = vmatpush1.msra.mxu0 0.0
        %1127 = vmatprep.subr.mxu0 0.0
        %1128 = vmatpush1.msra.mxu0 0.0
        %1129 = vmatprep.subr.mxu0 0.0
        %1130 = vmatpush1.msra.mxu0 0.0
        %1131 = vmatprep.mubr.f32.mxu0 0.0
        %1132 = vmatmul.mubr.f32.gmra.mrb[0].mxu0 %v1061
        %v1133 = vpop.f32.mrb[0].mxu0
        %v1134 = vadd.f32 %v1047, %v1133
        %v1135 = vpop.f32.mrb[0].mxu0
        %v1136 = vadd.f32 %v1049, %v1135
        %1137 = vdwg.mxu0
        %s1138 = scalar_lea.vmem %s3, 32
        %v1139 = vld [vmem:[%s1138] sm:$0xf]
        %1140 = vrot.lane.b32.xlu0 %v402, 94
        %v1141 = vpop.permute.xlu0 %1140
        %1142 = vrot.lane.b32.xlu0 %v399, 94
        %v1143 = vpop.permute.xlu0 %1142
        %1144 = vrot.lane.b32.xlu0 %v403, 94
        %v1145 = vpop.permute.xlu0 %1144
        %vm1146 = vcmask 769024
        %v1147 = vsel %vm1146, %v1141, %v1143
        %v1148 = vsel %vm1146, %v1143, %v1145
        %v1150 = vsel %vm419, %v1139, 0
        %v1152 = vsel %vm423, %v1147, 0
        %v1154 = vsel %vm423, %v1148, 0
        %1156 = vmatprep.subr.mxu0 %v1154
        %1157 = vmatpush1.msra.mxu0 %v1152
        %1158 = vmatprep.subr.mxu0 0.0
        %1159 = vmatpush1.msra.mxu0 0.0
        %1160 = vmatprep.subr.mxu0 0.0
        %1161 = vmatpush1.msra.mxu0 0.0
        %1162 = vmatprep.subr.mxu0 0.0
        %1163 = vmatpush1.msra.mxu0 0.0
        %1164 = vmatprep.subr.mxu0 0.0
        %1165 = vmatpush1.msra.mxu0 0.0
        %1166 = vmatprep.subr.mxu0 0.0
        %1167 = vmatpush1.msra.mxu0 0.0
        %1168 = vmatprep.subr.mxu0 0.0
        %1169 = vmatpush1.msra.mxu0 0.0
        %1170 = vmatprep.subr.mxu0 0.0
        %1171 = vmatpush1.msra.mxu0 0.0
        %1172 = vmatprep.subr.mxu0 0.0
        %1173 = vmatpush1.msra.mxu0 0.0
        %1174 = vmatprep.subr.mxu0 0.0
        %1175 = vmatpush1.msra.mxu0 0.0
        %1176 = vmatprep.subr.mxu0 0.0
        %1177 = vmatpush1.msra.mxu0 0.0
        %1178 = vmatprep.subr.mxu0 0.0
        %1179 = vmatpush1.msra.mxu0 0.0
        %1180 = vmatprep.subr.mxu0 0.0
        %1181 = vmatpush1.msra.mxu0 0.0
        %1182 = vmatprep.subr.mxu0 0.0
        %1183 = vmatpush1.msra.mxu0 0.0
        %1184 = vmatprep.subr.mxu0 0.0
        %1185 = vmatpush1.msra.mxu0 0.0
        %1186 = vmatprep.subr.mxu0 0.0
        %1187 = vmatpush1.msra.mxu0 0.0
        %1188 = vmatprep.subr.mxu0 0.0
        %1189 = vmatpush1.msra.mxu0 0.0
        %1190 = vmatprep.subr.mxu0 0.0
        %1191 = vmatpush1.msra.mxu0 0.0
        %1192 = vmatprep.subr.mxu0 0.0
        %1193 = vmatpush1.msra.mxu0 0.0
        %1194 = vmatprep.subr.mxu0 0.0
        %1195 = vmatpush1.msra.mxu0 0.0
        %1196 = vmatprep.subr.mxu0 0.0
        %1197 = vmatpush1.msra.mxu0 0.0
        %1198 = vmatprep.subr.mxu0 0.0
        %1199 = vmatpush1.msra.mxu0 0.0
        %1200 = vmatprep.subr.mxu0 0.0
        %1201 = vmatpush1.msra.mxu0 0.0
        %1202 = vmatprep.subr.mxu0 0.0
        %1203 = vmatpush1.msra.mxu0 0.0
        %1204 = vmatprep.subr.mxu0 0.0
        %1205 = vmatpush1.msra.mxu0 0.0
        %1206 = vmatprep.subr.mxu0 0.0
        %1207 = vmatpush1.msra.mxu0 0.0
        %1208 = vmatprep.subr.mxu0 0.0
        %1209 = vmatpush1.msra.mxu0 0.0
        %1210 = vmatprep.subr.mxu0 0.0
        %1211 = vmatpush1.msra.mxu0 0.0
        %1212 = vmatprep.subr.mxu0 0.0
        %1213 = vmatpush1.msra.mxu0 0.0
        %1214 = vmatprep.subr.mxu0 0.0
        %1215 = vmatpush1.msra.mxu0 0.0
        %1216 = vmatprep.subr.mxu0 0.0
        %1217 = vmatpush1.msra.mxu0 0.0
        %1218 = vmatprep.subr.mxu0 0.0
        %1219 = vmatpush1.msra.mxu0 0.0
        %1220 = vmatprep.mubr.f32.mxu0 0.0
        %1221 = vmatmul.mubr.f32.gmra.mrb[0].mxu0 %v1150
        %v1222 = vpop.f32.mrb[0].mxu0
        %v1223 = vadd.f32 0.0, %v1222
        %v1224 = vpop.f32.mrb[0].mxu0
        %v1225 = vadd.f32 0.0, %v1224
        %1226 = vdwg.mxu0
        %v1227 = vadd.f32 %v1134, %v1223
        %v1228 = vadd.f32 %v1136, %v1225
        %v1229 = vlaneseq
        %v1230 = vshrl.u32 %v1229, 7
        %v1231 = vsub.s32 1, %v1230
        %v1232 = vrot.slane %v404, %v1231
        %v1233 = vlaneseq
        %v1234 = vshrl.u32 %v1233, 7
        %v1235 = vsub.s32 3, %v1234
        %v1236 = vrot.slane %v404, %v1235
        %v1239 = vlaneseq
        %v1240 = vshrl.u32 %v1239, 7
        %v1241 = vsub.s32 1, %v1240
        %v1242 = vrot.slane %v1232, %v1241
        %v1243 = vlaneseq
        %v1244 = vshrl.u32 %v1243, 7
        %v1245 = vsub.s32 1, %v1244
        %v1246 = vrot.slane %v1236, %v1245
        %v1247 = vmul.f32 %v1227, %v1242
        %v1248 = vmul.f32 %v1228, %v1246
        %v1249 = vadd.f32 %v958, %v1247
        %v1250 = vadd.f32 %v959, %v1248
        %v1251 = vld [vmem:[%s4] sm:$0xf]
        %1253 = vset.pattern.permute.xlu0 0
        %1254 = vperm.xlu0 %1253, %v1251
        %v1255 = vpop.permute.xlu0 %1254
        %v1257 = vadd.f32 %v1249, %v1255
        %v1258 = vadd.f32 %v1250, %v1255
        %v1259 = vmax.f32 %v1257, 0.0
        %v1260 = vmax.f32 %v1258, 0.0
        %v1261 = vld [vmem:[%s5] sm:$0xff]
        %v1262 = vld [vmem:[%s5 + $0x8] sm:$0xff]
        %v1263 = vld [vmem:[%s6] sm:$0xff]
        %v1264 = vld [vmem:[%s6 + $0x8] sm:$0xff]
        %1266 = vset.pattern.permute.xlu0 0
        %1267 = vperm.xlu0 %1266, %v1263
        %v1268 = vpop.permute.xlu0 %1267
        %1271 = vset.pattern.permute.xlu0 0
        %1272 = vperm.xlu0 %1271, %v1264
        %v1273 = vpop.permute.xlu0 %1272
        %v1276 = vsel %vm419, %v1261, 0
        %v1279 = vsel %vm419, %v1262, 0
        %v1282 = vsel %vm423, %v1259, 0
        %v1285 = vsel %vm423, %v1260, 0
        %1287 = vmatprep.subr.mxu0 %v1285
        %1288 = vmatpush1.msra.mxu0 %v1282
        %1289 = vmatprep.subr.mxu0 0.0
        %1290 = vmatpush1.msra.mxu0 0.0
        %1291 = vmatprep.subr.mxu0 0.0
        %1292 = vmatpush1.msra.mxu0 0.0
        %1293 = vmatprep.subr.mxu0 0.0
        %1294 = vmatpush1.msra.mxu0 0.0
        %1295 = vmatprep.subr.mxu0 0.0
        %1296 = vmatpush1.msra.mxu0 0.0
        %1297 = vmatprep.subr.mxu0 0.0
        %1298 = vmatpush1.msra.mxu0 0.0
        %1299 = vmatprep.subr.mxu0 0.0
        %1300 = vmatpush1.msra.mxu0 0.0
        %1301 = vmatprep.subr.mxu0 0.0
        %1302 = vmatpush1.msra.mxu0 0.0
        %1303 = vmatprep.subr.mxu0 0.0
        %1304 = vmatpush1.msra.mxu0 0.0
        %1305 = vmatprep.subr.mxu0 0.0
        %1306 = vmatpush1.msra.mxu0 0.0
        %1307 = vmatprep.subr.mxu0 0.0
        %1308 = vmatpush1.msra.mxu0 0.0
        %1309 = vmatprep.subr.mxu0 0.0
        %1310 = vmatpush1.msra.mxu0 0.0
        %1311 = vmatprep.subr.mxu0 0.0
        %1312 = vmatpush1.msra.mxu0 0.0
        %1313 = vmatprep.subr.mxu0 0.0
        %1314 = vmatpush1.msra.mxu0 0.0
        %1315 = vmatprep.subr.mxu0 0.0
        %1316 = vmatpush1.msra.mxu0 0.0
        %1317 = vmatprep.subr.mxu0 0.0
        %1318 = vmatpush1.msra.mxu0 0.0
        %1319 = vmatprep.subr.mxu0 0.0
        %1320 = vmatpush1.msra.mxu0 0.0
        %1321 = vmatprep.subr.mxu0 0.0
        %1322 = vmatpush1.msra.mxu0 0.0
        %1323 = vmatprep.subr.mxu0 0.0
        %1324 = vmatpush1.msra.mxu0 0.0
        %1325 = vmatprep.subr.mxu0 0.0
        %1326 = vmatpush1.msra.mxu0 0.0
        %1327 = vmatprep.subr.mxu0 0.0
        %1328 = vmatpush1.msra.mxu0 0.0
        %1329 = vmatprep.subr.mxu0 0.0
        %1330 = vmatpush1.msra.mxu0 0.0
        %1331 = vmatprep.subr.mxu0 0.0
        %1332 = vmatpush1.msra.mxu0 0.0
        %1333 = vmatprep.subr.mxu0 0.0
        %1334 = vmatpush1.msra.mxu0 0.0
        %1335 = vmatprep.subr.mxu0 0.0
        %1336 = vmatpush1.msra.mxu0 0.0
        %1337 = vmatprep.subr.mxu0 0.0
        %1338 = vmatpush1.msra.mxu0 0.0
        %1339 = vmatprep.subr.mxu0 0.0
        %1340 = vmatpush1.msra.mxu0 0.0
        %1341 = vmatprep.subr.mxu0 0.0
        %1342 = vmatpush1.msra.mxu0 0.0
        %1343 = vmatprep.subr.mxu0 0.0
        %1344 = vmatpush1.msra.mxu0 0.0
        %1345 = vmatprep.subr.mxu0 0.0
        %1346 = vmatpush1.msra.mxu0 0.0
        %1347 = vmatprep.subr.mxu0 0.0
        %1348 = vmatpush1.msra.mxu0 0.0
        %1349 = vmatprep.subr.mxu0 0.0
        %1350 = vmatpush1.msra.mxu0 0.0
        %1351 = vmatprep.mubr.f32.mxu0 0.0
        %1352 = vmatmul.mubr.f32.gmra.mrb[0].mxu0 %v1276
        %v1353 = vpop.f32.mrb[0].mxu0
        %v1354 = vadd.f32 %v1268, %v1353
        %v1355 = vpop.f32.mrb[0].mxu0
        %v1356 = vadd.f32 %v1268, %v1355
        %1357 = vmatprep.mubr.f32.mxu0 0.0
        %1358 = vmatmul.mubr.f32.gmra.mrb[0].mxu0 %v1279
        %v1359 = vpop.f32.mrb[0].mxu0
        %v1360 = vadd.f32 %v1273, %v1359
        %v1361 = vpop.f32.mrb[0].mxu0
        %v1362 = vadd.f32 %v1273, %v1361
        %1363 = vdwg.mxu0
        %v1364 = vadd.f32 %v1354, %v304
        %v1365 = vadd.f32 %v1356, %v305
        %v1366 = vadd.f32 %v1360, %v306
        %v1367 = vadd.f32 %v1362, %v307
        %v1368 = vmax.f32 %v1364, 0.0
        %v1369 = vmax.f32 %v1365, 0.0
        %v1370 = vmax.f32 %v1366, 0.0
        %v1371 = vmax.f32 %v1367, 0.0
        %1372 = vst [vmem:[%s298] sm:$0xff] %v1368
        %1373 = vst [vmem:[%s298 + $0x8] sm:$0xff] %v1369
        %1374 = vst [vmem:[%s298 + $0x10] sm:$0xff] %v1370
        %1375 = vst [vmem:[%s298 + $0x18] sm:$0xff] %v1371
        %s1376 = sand.u32 %s203, 1
        %s1377 = scalar_lea.sflag [#allocation3], %s1376
        %s1378 = sand.u32 %s203, 1
        %s1379 = smul.addr %s1378, 32
        %s1380 = scalar_lea.vmem [#allocation2], %s1379
        // Predicated region
        $region53: #{tpu_custom_call.1} parent=51 // pred_check
          %p1381 = pneg %p213
        $region54: #{tpu_custom_call.1} parent=51 // pred_check_branch
          %1383 = sbr.rel (%p1381) target = $region56
        $region55: #{tpu_custom_call.1} parent=51 // pred_region
          %s1385 = ssub.s32 512, 512
          %1386 = vsyncadd %s1377, %s1385
          %s1387 = smul.addr %s22, 4
          %s1388 = smul.addr %s1387, 128
          %s1389 = scalar_lea.hbm %s8, %s1388
          %s1390 = sshll.u32 %s1380, 4
          %s1391 = int_to_ptr.vmem [resolvable:$true] %s1390
          %1396 = dma.vmem_to_hbm [thread:$0]  %s1391, 512, %s1389, %s1377, 256, 256, 16
        $region56: #{tpu_custom_call.1} parent=51 // pred_fallthru
          _
      $region52: #{tpu_custom_call.1} parent=5 // pred_fallthru
        _
      %p1397 = scmp.le.s32.totalorder 2, %s17
      // Predicated region
      $region57: #{tpu_custom_call.1} parent=5 // pred_check
        %p1398 = pneg %p1397
      $region58: #{tpu_custom_call.1} parent=5 // pred_check_branch
        %1400 = sbr.rel (%p1398) target = $region60
      $region59: #{tpu_custom_call.1} parent=5 // pred_region
        %s1401 = ssub.s32 %s17, 2
        // Predicated region
        $region61: #{tpu_custom_call.1} parent=59 // pred_check
          %p1402 = pneg %p219
        $region62: #{tpu_custom_call.1} parent=59 // pred_check_branch
          %1404 = sbr.rel (%p1402) target = $region64
        $region63: #{tpu_custom_call.1} parent=59 // pred_region
          %s1405 = sand.u32 %s204, 1
          %s1406 = scalar_lea.sflag [#allocation3], %s1405
          %s1407 = sand.u32 %s204, 1
          %s1408 = smul.addr %s1407, 32
          %s1409 = scalar_lea.vmem [#allocation2], %s1408
          %1410 = dma.done %s1406, 512
        $region64: #{tpu_custom_call.1} parent=59 // pred_fallthru
          _
      $region60: #{tpu_custom_call.1} parent=5 // pred_fallthru
        _
    $region6: #{tpu_custom_call.1} parent=1 // loop_footer
      %s21 = sadd.s32 1, %s17
    $region7: #{tpu_custom_call.1} parent=1 // loop_footer_branch
      %16 = sbr.rel target = $region3
    $region8: #{tpu_custom_call.1} parent=1 // loop_exit
      _
    %1411 = vsyncpa [#allocation3], 1
    %s1412 = scalar_lea.sflag [#allocation3], 1
    %1413 = vsyncpa %s1412, 1

</llo_original>
